<compile_context>
chip_gen: v6e
topology: v6e:2x2x1
jax: 0.10.0
libtpu: 0.0.40
codegen_flags: <defaults>
</compile_context>

<pallas_src>
import functools

import jax
import jax.numpy as jnp
from jax.experimental import pallas as pl
from jax.experimental.pallas import tpu as pltpu


# ----------------------------------------------------------------------------
# Pallas kernels
# ----------------------------------------------------------------------------

def _sa_msg_kernel(nb, BS, K_list, channels_list, *refs):
    """Fused multi-branch pointwise-MLP + max-over-K for one MSG SA level.

    refs layout: g_0..g_{nb-1}  (each [K_i*BS, C0_i], rows K-major),
                 then for branch i, layer l: W_il [C_l, C_{l+1}] (BN scale folded),
                                             sh_il [1, C_{l+1}],
                 then out_ref [BS, sum_i C_last_i].
    """
    g_refs = refs[:nb]
    out_ref = refs[-1]
    p_refs = refs[nb:-1]

    pi = 0
    outs = []
    for i in range(nb):
        chans = channels_list[i]
        K = K_list[i]
        x = g_refs[i][...]                                   # [K*BS, C0]
        for l in range(len(chans) - 1):
            W = p_refs[pi][...]
            sh = p_refs[pi + 1][...]
            pi += 2
            cin = chans[l]
            if cin <= 4:
                # Tiny contraction (e.g. raw xyz, C_in=3): broadcast FMAs on the VPU
                # instead of a near-empty MXU pass.
                y = x[:, 0:1] * W[0:1, :]
                for c in range(1, cin):
                    y = y + x[:, c:c + 1] * W[c:c + 1, :]
            else:
                y = jnp.dot(x, W, preferred_element_type=jnp.float32)
            x = jnp.maximum(y + sh, 0.0)                      # BN shift + ReLU
        # Max over nsample K: rows are K-major, so this is K-1 aligned
        # sublane-slice element-wise maxes (no reshape / relayout).
        m = x[0:BS, :]
        for k in range(1, K):
            m = jnp.maximum(m, x[k * BS:(k + 1) * BS, :])
        outs.append(m)                                        # [BS, C_last_i]
    out_ref[...] = outs[0] if nb == 1 else jnp.concatenate(outs, axis=-1)


def sa_msg_mlp_max(g_list, params_flat, channels_list, K_list, BS):
    """Single pallas_call for a whole MSG SA level (all branches, all batches)."""
    nb = len(g_list)
    c_total = sum(ch[-1] for ch in channels_list)
    kernel = functools.partial(_sa_msg_kernel, nb, BS, tuple(K_list),
                               tuple(tuple(c) for c in channels_list))
    args = (*g_list, *params_flat)
    in_specs = [pl.BlockSpec(a.shape, lambda i, nd=a.ndim: (0,) * nd) for a in args]
    return pl.pallas_call(
        kernel,
        grid=(1,),
        in_specs=in_specs,
        out_specs=pl.BlockSpec((BS, c_total), lambda i: (0, 0)),
        out_shape=jax.ShapeDtypeStruct((BS, c_total), jnp.float32),
        compiler_params=pltpu.CompilerParams(dimension_semantics=("arbitrary",)),
    )(*args)


def _sa3_head_kernel(B, N, sa_chans, n_hidden, *refs):
    """Fused group_all SA (pointwise MLP + global max over N) + FC head.

    refs: g [B*N, C0] (rows batch-major, point-fast),
          per sa3 layer: (W, shift), per head hidden layer: (W, shift),
          W_last, b_last, out_ref [B, out_dim].
    """
    g_ref = refs[0]
    out_ref = refs[-1]
    p_refs = refs[1:-1]

    pi = 0
    x = g_ref[...]                                            # [B*N, C0]
    for _ in range(len(sa_chans) - 1):
        W = p_refs[pi][...]
        sh = p_refs[pi + 1][...]
        pi += 2
        x = jnp.maximum(jnp.dot(x, W, preferred_element_type=jnp.float32) + sh, 0.0)
    # Global max over the N grouped points of each batch element (aligned 8-row
    # sublane reductions since N == 8).
    rows = [jnp.max(x[b * N:(b + 1) * N, :], axis=0, keepdims=True) for b in range(B)]
    h = jnp.concatenate(rows, axis=0)                         # [B, C_last]
    for _ in range(n_hidden):
        W = p_refs[pi][...]
        sh = p_refs[pi + 1][...]
        pi += 2
        h = jnp.maximum(jnp.dot(h, W, preferred_element_type=jnp.float32) + sh, 0.0)
    W_last = p_refs[pi][...]
    b_last = p_refs[pi + 1][...]
    out_ref[...] = jnp.dot(h, W_last, preferred_element_type=jnp.float32) + b_last


def sa3_head_mlp(g, sa3_params, head_params, B, N):
    sa_Ws, sa_sh = sa3_params
    hWs, hsh, W_last, b_last = head_params
    sa_chans = [g.shape[-1]] + [w.shape[1] for w in sa_Ws]
    params_flat = []
    for W, s in zip(sa_Ws, sa_sh):
        params_flat += [W, s]
    for W, s in zip(hWs, hsh):
        params_flat += [W, s]
    params_flat += [W_last, b_last]
    out_dim = W_last.shape[1]
    kernel = functools.partial(_sa3_head_kernel, B, N, tuple(sa_chans), len(hWs))
    args = (g, *params_flat)
    in_specs = [pl.BlockSpec(a.shape, lambda i, nd=a.ndim: (0,) * nd) for a in args]
    return pl.pallas_call(
        kernel,
        grid=(1,),
        in_specs=in_specs,
        out_specs=pl.BlockSpec((B, out_dim), lambda i: (0, 0)),
        out_shape=jax.ShapeDtypeStruct((B, out_dim), jnp.float32),
        compiler_params=pltpu.CompilerParams(dimension_semantics=("arbitrary",)),
    )(*args)


# ----------------------------------------------------------------------------
# Plain-JAX glue (FPS / ball query / gather — data-dependent, no clean Pallas fit)
# ----------------------------------------------------------------------------

def farthest_point_sample(xyz, npoint):
    B, N, _ = xyz.shape
    distance = jnp.full((B, N), 1e10, jnp.float32)
    farthest = jnp.zeros((B,), dtype=jnp.int32)   # deterministic start (see TODO above)
    batch_indices = jnp.arange(B)
    centroids = []
    for _ in range(npoint):
        centroids.append(farthest)
        centroid = xyz[batch_indices, farthest, :][:, None, :]    # [B,1,3]
        dist = jnp.sum((xyz - centroid) ** 2, -1)
        distance = jnp.where(dist < distance, dist, distance)
        farthest = jnp.argmax(distance, -1).astype(jnp.int32)
    return jnp.stack(centroids, axis=1)                            # [B, npoint]


def index_points(points, idx):
    """points [B,N,C], idx [B,...]; -1 padding wraps to N-1 exactly like torch
    advanced indexing on pytorch3d's -1-padded ball_query output (reference behavior)."""
    B, N = points.shape[0], points.shape[1]
    idx = jnp.where(idx < 0, idx + N, idx)
    batch_idx = jnp.arange(B).reshape((B,) + (1,) * (idx.ndim - 1))
    return points[batch_idx, idx]


def query_ball_point(radius, nsample, xyz, new_xyz):
    """pytorch3d-style ball_query: first K in-radius indices, -1 padded."""
    B, N, _ = xyz.shape
    d2 = jnp.sum((new_xyz[:, :, None, :] - xyz[:, None, :, :]) ** 2, axis=-1)  # [B,S,N]
    mask = d2 < radius * radius
    ar = jnp.arange(N)
    key = jnp.where(mask, ar, N + ar)
    order = jnp.argsort(key, axis=-1)[:, :, :nsample]
    counts = jnp.sum(mask, axis=-1, keepdims=True)
    valid = jnp.arange(nsample)[None, None, :] < counts
    return jnp.where(valid, order, -1)


# ----------------------------------------------------------------------------
# Set-abstraction level wrappers (channels-last end to end)
# ----------------------------------------------------------------------------

def sa_msg_forward(block_params, npoint, radius_list, nsample_list, xyz, points):
    """xyz: [B,N,3], points: [B,N,D] or None -> ([B,S,3], [B,S,sum(C_last)])."""
    B, N, _ = xyz.shape
    S = npoint
    fps_idx = farthest_point_sample(xyz, S)
    new_xyz = index_points(xyz, fps_idx)                        # [B,S,3]

    g_list, params_flat, channels_list, K_list = [], [], [], []
    for i, radius in enumerate(radius_list):
        K = nsample_list[i]
        group_idx = query_ball_point(radius, K, xyz, new_xyz)
        grouped_xyz = index_points(xyz, group_idx) - new_xyz[:, :, None, :]   # [B,S,K,3]
        if points is not None:
            grouped = jnp.concatenate(
                [index_points(points, group_idx), grouped_xyz], axis=-1)      # [B,S,K,D+3]
        else:
            grouped = grouped_xyz
        # [B,S,K,C] -> [K, B*S, C]  (K-major so the in-kernel max over K is plain
        # aligned sublane-slice maxes — no reshape inside the kernel)
        g = jnp.transpose(grouped, (2, 0, 1, 3)).reshape(K * B * S, grouped.shape[-1])
        g_list.append(g)
        Ws, shifts = block_params[i]
        for W, sh in zip(Ws, shifts):
            params_flat += [W, sh]
        channels_list.append([g.shape[-1]] + [w.shape[1] for w in Ws])
        K_list.append(K)

    new_points = sa_msg_mlp_max(g_list, params_flat, channels_list, K_list, B * S)
    return new_xyz, new_points.reshape(B, S, -1)


def sa3_head_forward(sa3_params, head_params, xyz, points):
    """group_all SA + FC head: xyz [B,N,3], points [B,N,D] -> [B, output_dim]."""
    B, N, _ = xyz.shape
    grouped = jnp.concatenate([xyz, points], axis=-1)           # [B,N,3+D]
    g = grouped.reshape(B * N, grouped.shape[-1])
    return sa3_head_mlp(g, sa3_params, head_params, B, N)


def pointnet2_forward(params, cfg, x):
    """x: [B, N, 3] (info_dim == 0 config)."""
    B, N, D = x.shape
    # Reference does xyz.view(B, D, N) (a reshape, NOT a permute); replicate exactly,
    # then permute to channels-last as the SA modules do internally.
    xyz_cf = jnp.reshape(x, (B, D, N))
    if cfg["info_dim"] > 0:
        info = jnp.transpose(xyz_cf[:, 3:, :], (0, 2, 1))
        xyz_cf = xyz_cf[:, :3, :]
    else:
        info = None
    xyz = jnp.transpose(xyz_cf, (0, 2, 1))                      # [B,N,3]

    l1_xyz, l1_points = sa_msg_forward(params["sa1"], xyz=xyz, points=info, **cfg["sa1"])
    l2_xyz, l2_points = sa_msg_forward(params["sa2"], xyz=l1_xyz, points=l1_points,
                                       **cfg["sa2"])
    return sa3_head_forward(params["sa3"], params["head"], l2_xyz, l2_points)


# ----------------------------------------------------------------------------
# Deterministic parameter init (conv/linear weight + bias, eval-mode BN folded
# into the weight columns; only the shift remains as a separate operand)
# ----------------------------------------------------------------------------

def _fold_bn_into_weight(W, b, gamma, beta, mean, var, eps=1e-5):
    s = gamma / jnp.sqrt(var + eps)
    shift = beta + s * (b - mean)
    return jnp.transpose(W) * s[None, :], shift.reshape(1, -1)


def init_conv_bn_chain(key, channels):
    Ws, shifts = [], []
    for l in range(len(channels) - 1):
        cin, cout = channels[l], channels[l + 1]
        key, k1, k2, k3, k4, k5, k6 = jax.random.split(key, 7)
        W = 0.2 * jax.random.normal(k1, (cout, cin), jnp.float32)
        b = 0.1 * jax.random.normal(k2, (cout,), jnp.float32)
        gamma = 1.0 + 0.1 * jax.random.normal(k3, (cout,), jnp.float32)
        beta = 0.1 * jax.random.normal(k4, (cout,), jnp.float32)
        mean = 0.1 * jax.random.normal(k5, (cout,), jnp.float32)
        var = 1.0 + 0.1 * jax.random.uniform(k6, (cout,), jnp.float32)
        Wf, sh = _fold_bn_into_weight(W, b, gamma, beta, mean, var)
        Ws.append(Wf)
        shifts.append(sh)
    return key, (Ws, shifts)


# ----------------------------------------------------------------------------
# Main
# ----------------------------------------------------------------------------

if __name__ == "__main__":
    key = jax.random.PRNGKey(0)
    B, N, D = 2, 32, 3
    key, kx = jax.random.split(key)
    x = jax.random.uniform(kx, (B, N, D), jnp.float32)

    # Config (small, consistent with PointNet2Module's constructor)
    sa1_mlps = [[16, 16, 32], [16, 16, 32]]       # in_channel = 0  -> conv in = 0+3
    sa2_mlps = [[32, 32, 64], [32, 32, 64]]       # in_channel = 64 -> conv in = 64+3
    sa3_mlp = [64, 128]                           # in_channel = 128+3 = 131, group_all
    hidden_dim = [64]
    output_dim = 16

    params = {}
    sa1_params = []
    for mlp in sa1_mlps:
        key, p = init_conv_bn_chain(key, [0 + 3] + mlp)
        sa1_params.append(p)
    params["sa1"] = sa1_params

    sa2_params = []
    for mlp in sa2_mlps:
        key, p = init_conv_bn_chain(key, [64 + 3] + mlp)
        sa2_params.append(p)
    params["sa2"] = sa2_params

    key, params["sa3"] = init_conv_bn_chain(key, [131] + sa3_mlp)

    # Head: (Linear -> BN1d(eval) -> ReLU)^{L-1}, then final Linear (no norm/relu)
    mlp_dim = [sa3_mlp[-1]] + hidden_dim + [output_dim]
    hWs, hshifts = [], []
    for i in range(len(mlp_dim) - 2):
        key, (ws, shs) = init_conv_bn_chain(key, [mlp_dim[i], mlp_dim[i + 1]])
        hWs.append(ws[0])
        hshifts.append(shs[0])
    key, k1, k2 = jax.random.split(key, 3)
    Wl = 0.2 * jax.random.normal(k1, (mlp_dim[-1], mlp_dim[-2]), jnp.float32)
    bl = 0.1 * jax.random.normal(k2, (mlp_dim[-1],), jnp.float32)
    params["head"] = (hWs, hshifts, jnp.transpose(Wl), bl.reshape(1, -1))

    cfg = {
        "info_dim": 0,
        "sa1": dict(npoint=16, radius_list=[0.2, 0.4], nsample_list=[8, 8]),
        "sa2": dict(npoint=8, radius_list=[0.4, 0.8], nsample_list=[8, 8]),
    }

    out = pointnet2_forward(params, cfg, x)
    out = jax.block_until_ready(out)
    assert out.shape == (B, output_dim), out.shape
    print("KERNEL_OK")
</pallas_src>

<mosaic_0001>
module attributes {stable_mosaic.version = 11 : i64} {
  func.func @_sa_msg_kernel(%arg0: i32, %arg1: memref<256x3xf32, #tpu.memory_space<vmem>>, %arg2: memref<256x3xf32, #tpu.memory_space<vmem>>, %arg3: memref<3x16xf32, #tpu.memory_space<vmem>>, %arg4: memref<1x16xf32, #tpu.memory_space<vmem>>, %arg5: memref<16x16xf32, #tpu.memory_space<vmem>>, %arg6: memref<1x16xf32, #tpu.memory_space<vmem>>, %arg7: memref<16x32xf32, #tpu.memory_space<vmem>>, %arg8: memref<1x32xf32, #tpu.memory_space<vmem>>, %arg9: memref<3x16xf32, #tpu.memory_space<vmem>>, %arg10: memref<1x16xf32, #tpu.memory_space<vmem>>, %arg11: memref<16x16xf32, #tpu.memory_space<vmem>>, %arg12: memref<1x16xf32, #tpu.memory_space<vmem>>, %arg13: memref<16x32xf32, #tpu.memory_space<vmem>>, %arg14: memref<1x32xf32, #tpu.memory_space<vmem>>, %arg15: memref<32x64xf32, #tpu.memory_space<vmem>>) attributes {dimension_semantics = [#tpu.dimension_semantics<arbitrary>], iteration_bounds = array<i64: 1>, scalar_prefetch = 0 : i64, scratch_operands = 0 : i64, tpu.core_type = #tpu.core_type<tc>, window_params = [{pipeline_mode = #tpu.pipeline_mode<synchronous>, transform_indices = @transform_0, window_bounds = array<i64: 256, 3>}, {pipeline_mode = #tpu.pipeline_mode<synchronous>, transform_indices = @transform_1, window_bounds = array<i64: 256, 3>}, {pipeline_mode = #tpu.pipeline_mode<synchronous>, transform_indices = @transform_2, window_bounds = array<i64: 3, 16>}, {pipeline_mode = #tpu.pipeline_mode<synchronous>, transform_indices = @transform_3, window_bounds = array<i64: 1, 16>}, {pipeline_mode = #tpu.pipeline_mode<synchronous>, transform_indices = @transform_4, window_bounds = array<i64: 16, 16>}, {pipeline_mode = #tpu.pipeline_mode<synchronous>, transform_indices = @transform_5, window_bounds = array<i64: 1, 16>}, {pipeline_mode = #tpu.pipeline_mode<synchronous>, transform_indices = @transform_6, window_bounds = array<i64: 16, 32>}, {pipeline_mode = #tpu.pipeline_mode<synchronous>, transform_indices = @transform_7, window_bounds = array<i64: 1, 32>}, {pipeline_mode = #tpu.pipeline_mode<synchronous>, transform_indices = @transform_8, window_bounds = array<i64: 3, 16>}, {pipeline_mode = #tpu.pipeline_mode<synchronous>, transform_indices = @transform_9, window_bounds = array<i64: 1, 16>}, {pipeline_mode = #tpu.pipeline_mode<synchronous>, transform_indices = @transform_10, window_bounds = array<i64: 16, 16>}, {pipeline_mode = #tpu.pipeline_mode<synchronous>, transform_indices = @transform_11, window_bounds = array<i64: 1, 16>}, {pipeline_mode = #tpu.pipeline_mode<synchronous>, transform_indices = @transform_12, window_bounds = array<i64: 16, 32>}, {pipeline_mode = #tpu.pipeline_mode<synchronous>, transform_indices = @transform_13, window_bounds = array<i64: 1, 32>}, {pipeline_mode = #tpu.pipeline_mode<synchronous>, transform_indices = @transform_14, window_bounds = array<i64: 32, 64>}]} {
    %c0 = arith.constant 0 : index
    %c0_0 = arith.constant 0 : index
    %0 = vector.load %arg1[%c0, %c0_0] : memref<256x3xf32, #tpu.memory_space<vmem>>, vector<256x3xf32>
    %c0_1 = arith.constant 0 : index
    %c0_2 = arith.constant 0 : index
    %1 = vector.load %arg3[%c0_1, %c0_2] : memref<3x16xf32, #tpu.memory_space<vmem>>, vector<3x16xf32>
    %c0_3 = arith.constant 0 : index
    %c0_4 = arith.constant 0 : index
    %2 = vector.load %arg4[%c0_3, %c0_4] : memref<1x16xf32, #tpu.memory_space<vmem>>, vector<1x16xf32>
    %3 = vector.extract_strided_slice %0 {offsets = [0, 0], sizes = [256, 1], strides = [1, 1]} : vector<256x3xf32> to vector<256x1xf32>
    %4 = vector.extract_strided_slice %1 {offsets = [0, 0], sizes = [1, 16], strides = [1, 1]} : vector<3x16xf32> to vector<1x16xf32>
    %5 = vector.broadcast %3 : vector<256x1xf32> to vector<256x16xf32>
    %6 = vector.broadcast %4 : vector<1x16xf32> to vector<256x16xf32>
    %7 = arith.mulf %5, %6 : vector<256x16xf32>
    %8 = vector.extract_strided_slice %0 {offsets = [0, 1], sizes = [256, 1], strides = [1, 1]} : vector<256x3xf32> to vector<256x1xf32>
    %9 = vector.extract_strided_slice %1 {offsets = [1, 0], sizes = [1, 16], strides = [1, 1]} : vector<3x16xf32> to vector<1x16xf32>
    %10 = vector.broadcast %8 : vector<256x1xf32> to vector<256x16xf32>
    %11 = vector.broadcast %9 : vector<1x16xf32> to vector<256x16xf32>
    %12 = arith.mulf %10, %11 : vector<256x16xf32>
    %13 = arith.addf %7, %12 : vector<256x16xf32>
    %14 = vector.extract_strided_slice %0 {offsets = [0, 2], sizes = [256, 1], strides = [1, 1]} : vector<256x3xf32> to vector<256x1xf32>
    %15 = vector.extract_strided_slice %1 {offsets = [2, 0], sizes = [1, 16], strides = [1, 1]} : vector<3x16xf32> to vector<1x16xf32>
    %16 = vector.broadcast %14 : vector<256x1xf32> to vector<256x16xf32>
    %17 = vector.broadcast %15 : vector<1x16xf32> to vector<256x16xf32>
    %18 = arith.mulf %16, %17 : vector<256x16xf32>
    %19 = arith.addf %13, %18 : vector<256x16xf32>
    %20 = vector.broadcast %2 : vector<1x16xf32> to vector<256x16xf32>
    %21 = arith.addf %19, %20 : vector<256x16xf32>
    %cst = arith.constant 0.000000e+00 : f32
    %22 = vector.broadcast %cst : f32 to vector<256x16xf32>
    %23 = arith.maximumf %21, %22 : vector<256x16xf32>
    %c0_5 = arith.constant 0 : index
    %c0_6 = arith.constant 0 : index
    %24 = vector.load %arg5[%c0_5, %c0_6] : memref<16x16xf32, #tpu.memory_space<vmem>>, vector<16x16xf32>
    %c0_7 = arith.constant 0 : index
    %c0_8 = arith.constant 0 : index
    %25 = vector.load %arg6[%c0_7, %c0_8] : memref<1x16xf32, #tpu.memory_space<vmem>>, vector<1x16xf32>
    %cst_9 = arith.constant dense<0.000000e+00> : vector<256x16xf32>
    %26 = tpu.matmul %23, %24, %cst_9 {dimension_numbers = #tpu.dot_dimension_numbers<[1], [0], [0], [1], [0, 0, 1, 1], [], []>} : vector<256x16xf32>, vector<16x16xf32>, vector<256x16xf32> -> vector<256x16xf32>
    %27 = vector.broadcast %25 : vector<1x16xf32> to vector<256x16xf32>
    %28 = arith.addf %26, %27 : vector<256x16xf32>
    %cst_10 = arith.constant 0.000000e+00 : f32
    %29 = vector.broadcast %cst_10 : f32 to vector<256x16xf32>
    %30 = arith.maximumf %28, %29 : vector<256x16xf32>
    %c0_11 = arith.constant 0 : index
    %c0_12 = arith.constant 0 : index
    %31 = vector.load %arg7[%c0_11, %c0_12] : memref<16x32xf32, #tpu.memory_space<vmem>>, vector<16x32xf32>
    %c0_13 = arith.constant 0 : index
    %c0_14 = arith.constant 0 : index
    %32 = vector.load %arg8[%c0_13, %c0_14] : memref<1x32xf32, #tpu.memory_space<vmem>>, vector<1x32xf32>
    %cst_15 = arith.constant dense<0.000000e+00> : vector<256x32xf32>
    %33 = tpu.matmul %30, %31, %cst_15 {dimension_numbers = #tpu.dot_dimension_numbers<[1], [0], [0], [1], [0, 0, 1, 1], [], []>} : vector<256x16xf32>, vector<16x32xf32>, vector<256x32xf32> -> vector<256x32xf32>
    %34 = vector.broadcast %32 : vector<1x32xf32> to vector<256x32xf32>
    %35 = arith.addf %33, %34 : vector<256x32xf32>
    %cst_16 = arith.constant 0.000000e+00 : f32
    %36 = vector.broadcast %cst_16 : f32 to vector<256x32xf32>
    %37 = arith.maximumf %35, %36 : vector<256x32xf32>
    %38 = vector.extract_strided_slice %37 {offsets = [0, 0], sizes = [32, 32], strides = [1, 1]} : vector<256x32xf32> to vector<32x32xf32>
    %39 = vector.extract_strided_slice %37 {offsets = [32, 0], sizes = [32, 32], strides = [1, 1]} : vector<256x32xf32> to vector<32x32xf32>
    %40 = arith.maximumf %38, %39 : vector<32x32xf32>
    %41 = vector.extract_strided_slice %37 {offsets = [64, 0], sizes = [32, 32], strides = [1, 1]} : vector<256x32xf32> to vector<32x32xf32>
    %42 = arith.maximumf %40, %41 : vector<32x32xf32>
    %43 = vector.extract_strided_slice %37 {offsets = [96, 0], sizes = [32, 32], strides = [1, 1]} : vector<256x32xf32> to vector<32x32xf32>
    %44 = arith.maximumf %42, %43 : vector<32x32xf32>
    %45 = vector.extract_strided_slice %37 {offsets = [128, 0], sizes = [32, 32], strides = [1, 1]} : vector<256x32xf32> to vector<32x32xf32>
    %46 = arith.maximumf %44, %45 : vector<32x32xf32>
    %47 = vector.extract_strided_slice %37 {offsets = [160, 0], sizes = [32, 32], strides = [1, 1]} : vector<256x32xf32> to vector<32x32xf32>
    %48 = arith.maximumf %46, %47 : vector<32x32xf32>
    %49 = vector.extract_strided_slice %37 {offsets = [192, 0], sizes = [32, 32], strides = [1, 1]} : vector<256x32xf32> to vector<32x32xf32>
    %50 = arith.maximumf %48, %49 : vector<32x32xf32>
    %51 = vector.extract_strided_slice %37 {offsets = [224, 0], sizes = [32, 32], strides = [1, 1]} : vector<256x32xf32> to vector<32x32xf32>
    %52 = arith.maximumf %50, %51 : vector<32x32xf32>
    %c0_17 = arith.constant 0 : index
    %c0_18 = arith.constant 0 : index
    %53 = vector.load %arg2[%c0_17, %c0_18] : memref<256x3xf32, #tpu.memory_space<vmem>>, vector<256x3xf32>
    %c0_19 = arith.constant 0 : index
    %c0_20 = arith.constant 0 : index
    %54 = vector.load %arg9[%c0_19, %c0_20] : memref<3x16xf32, #tpu.memory_space<vmem>>, vector<3x16xf32>
    %c0_21 = arith.constant 0 : index
    %c0_22 = arith.constant 0 : index
    %55 = vector.load %arg10[%c0_21, %c0_22] : memref<1x16xf32, #tpu.memory_space<vmem>>, vector<1x16xf32>
    %56 = vector.extract_strided_slice %53 {offsets = [0, 0], sizes = [256, 1], strides = [1, 1]} : vector<256x3xf32> to vector<256x1xf32>
    %57 = vector.extract_strided_slice %54 {offsets = [0, 0], sizes = [1, 16], strides = [1, 1]} : vector<3x16xf32> to vector<1x16xf32>
    %58 = vector.broadcast %56 : vector<256x1xf32> to vector<256x16xf32>
    %59 = vector.broadcast %57 : vector<1x16xf32> to vector<256x16xf32>
    %60 = arith.mulf %58, %59 : vector<256x16xf32>
    %61 = vector.extract_strided_slice %53 {offsets = [0, 1], sizes = [256, 1], strides = [1, 1]} : vector<256x3xf32> to vector<256x1xf32>
    %62 = vector.extract_strided_slice %54 {offsets = [1, 0], sizes = [1, 16], strides = [1, 1]} : vector<3x16xf32> to vector<1x16xf32>
    %63 = vector.broadcast %61 : vector<256x1xf32> to vector<256x16xf32>
    %64 = vector.broadcast %62 : vector<1x16xf32> to vector<256x16xf32>
    %65 = arith.mulf %63, %64 : vector<256x16xf32>
    %66 = arith.addf %60, %65 : vector<256x16xf32>
    %67 = vector.extract_strided_slice %53 {offsets = [0, 2], sizes = [256, 1], strides = [1, 1]} : vector<256x3xf32> to vector<256x1xf32>
    %68 = vector.extract_strided_slice %54 {offsets = [2, 0], sizes = [1, 16], strides = [1, 1]} : vector<3x16xf32> to vector<1x16xf32>
    %69 = vector.broadcast %67 : vector<256x1xf32> to vector<256x16xf32>
    %70 = vector.broadcast %68 : vector<1x16xf32> to vector<256x16xf32>
    %71 = arith.mulf %69, %70 : vector<256x16xf32>
    %72 = arith.addf %66, %71 : vector<256x16xf32>
    %73 = vector.broadcast %55 : vector<1x16xf32> to vector<256x16xf32>
    %74 = arith.addf %72, %73 : vector<256x16xf32>
    %cst_23 = arith.constant 0.000000e+00 : f32
    %75 = vector.broadcast %cst_23 : f32 to vector<256x16xf32>
    %76 = arith.maximumf %74, %75 : vector<256x16xf32>
    %c0_24 = arith.constant 0 : index
    %c0_25 = arith.constant 0 : index
    %77 = vector.load %arg11[%c0_24, %c0_25] : memref<16x16xf32, #tpu.memory_space<vmem>>, vector<16x16xf32>
    %c0_26 = arith.constant 0 : index
    %c0_27 = arith.constant 0 : index
    %78 = vector.load %arg12[%c0_26, %c0_27] : memref<1x16xf32, #tpu.memory_space<vmem>>, vector<1x16xf32>
    %cst_28 = arith.constant dense<0.000000e+00> : vector<256x16xf32>
    %79 = tpu.matmul %76, %77, %cst_28 {dimension_numbers = #tpu.dot_dimension_numbers<[1], [0], [0], [1], [0, 0, 1, 1], [], []>} : vector<256x16xf32>, vector<16x16xf32>, vector<256x16xf32> -> vector<256x16xf32>
    %80 = vector.broadcast %78 : vector<1x16xf32> to vector<256x16xf32>
    %81 = arith.addf %79, %80 : vector<256x16xf32>
    %cst_29 = arith.constant 0.000000e+00 : f32
    %82 = vector.broadcast %cst_29 : f32 to vector<256x16xf32>
    %83 = arith.maximumf %81, %82 : vector<256x16xf32>
    %c0_30 = arith.constant 0 : index
    %c0_31 = arith.constant 0 : index
    %84 = vector.load %arg13[%c0_30, %c0_31] : memref<16x32xf32, #tpu.memory_space<vmem>>, vector<16x32xf32>
    %c0_32 = arith.constant 0 : index
    %c0_33 = arith.constant 0 : index
    %85 = vector.load %arg14[%c0_32, %c0_33] : memref<1x32xf32, #tpu.memory_space<vmem>>, vector<1x32xf32>
    %cst_34 = arith.constant dense<0.000000e+00> : vector<256x32xf32>
    %86 = tpu.matmul %83, %84, %cst_34 {dimension_numbers = #tpu.dot_dimension_numbers<[1], [0], [0], [1], [0, 0, 1, 1], [], []>} : vector<256x16xf32>, vector<16x32xf32>, vector<256x32xf32> -> vector<256x32xf32>
    %87 = vector.broadcast %85 : vector<1x32xf32> to vector<256x32xf32>
    %88 = arith.addf %86, %87 : vector<256x32xf32>
    %cst_35 = arith.constant 0.000000e+00 : f32
    %89 = vector.broadcast %cst_35 : f32 to vector<256x32xf32>
    %90 = arith.maximumf %88, %89 : vector<256x32xf32>
    %91 = vector.extract_strided_slice %90 {offsets = [0, 0], sizes = [32, 32], strides = [1, 1]} : vector<256x32xf32> to vector<32x32xf32>
    %92 = vector.extract_strided_slice %90 {offsets = [32, 0], sizes = [32, 32], strides = [1, 1]} : vector<256x32xf32> to vector<32x32xf32>
    %93 = arith.maximumf %91, %92 : vector<32x32xf32>
    %94 = vector.extract_strided_slice %90 {offsets = [64, 0], sizes = [32, 32], strides = [1, 1]} : vector<256x32xf32> to vector<32x32xf32>
    %95 = arith.maximumf %93, %94 : vector<32x32xf32>
    %96 = vector.extract_strided_slice %90 {offsets = [96, 0], sizes = [32, 32], strides = [1, 1]} : vector<256x32xf32> to vector<32x32xf32>
    %97 = arith.maximumf %95, %96 : vector<32x32xf32>
    %98 = vector.extract_strided_slice %90 {offsets = [128, 0], sizes = [32, 32], strides = [1, 1]} : vector<256x32xf32> to vector<32x32xf32>
    %99 = arith.maximumf %97, %98 : vector<32x32xf32>
    %100 = vector.extract_strided_slice %90 {offsets = [160, 0], sizes = [32, 32], strides = [1, 1]} : vector<256x32xf32> to vector<32x32xf32>
    %101 = arith.maximumf %99, %100 : vector<32x32xf32>
    %102 = vector.extract_strided_slice %90 {offsets = [192, 0], sizes = [32, 32], strides = [1, 1]} : vector<256x32xf32> to vector<32x32xf32>
    %103 = arith.maximumf %101, %102 : vector<32x32xf32>
    %104 = vector.extract_strided_slice %90 {offsets = [224, 0], sizes = [32, 32], strides = [1, 1]} : vector<256x32xf32> to vector<32x32xf32>
    %105 = arith.maximumf %103, %104 : vector<32x32xf32>
    %106 = tpu.concatenate %52, %105 in 1 : vector<32x32xf32>, vector<32x32xf32> -> vector<32x64xf32>
    %c0_36 = arith.constant 0 : index
    %c0_37 = arith.constant 0 : index
    %107 = vector.load %arg15[%c0_36, %c0_37] : memref<32x64xf32, #tpu.memory_space<vmem>>, vector<32x64xf32>
    tpu.vector_store %arg15[%c0_36, %c0_37], %106 {strides = array<i32>} : memref<32x64xf32, #tpu.memory_space<vmem>>, vector<32x64xf32>,
    return
  }
  func.func @transform_0(%arg0: i32) -> (i32, i32) {
    %c0_i32 = arith.constant 0 : i32
    %c0_i32_0 = arith.constant 0 : i32
    %c0_i32_1 = arith.constant 0 : i32
    return %c0_i32, %c0_i32_0 : i32, i32
  }
  func.func @transform_1(%arg0: i32) -> (i32, i32) {
    %c0_i32 = arith.constant 0 : i32
    %c0_i32_0 = arith.constant 0 : i32
    %c0_i32_1 = arith.constant 0 : i32
    return %c0_i32, %c0_i32_0 : i32, i32
  }
  func.func @transform_2(%arg0: i32) -> (i32, i32) {
    %c0_i32 = arith.constant 0 : i32
    %c0_i32_0 = arith.constant 0 : i32
    %c0_i32_1 = arith.constant 0 : i32
    return %c0_i32, %c0_i32_0 : i32, i32
  }
  func.func @transform_3(%arg0: i32) -> (i32, i32) {
    %c0_i32 = arith.constant 0 : i32
    %c0_i32_0 = arith.constant 0 : i32
    %c0_i32_1 = arith.constant 0 : i32
    return %c0_i32, %c0_i32_0 : i32, i32
  }
  func.func @transform_4(%arg0: i32) -> (i32, i32) {
    %c0_i32 = arith.constant 0 : i32
    %c0_i32_0 = arith.constant 0 : i32
    %c0_i32_1 = arith.constant 0 : i32
    return %c0_i32, %c0_i32_0 : i32, i32
  }
  func.func @transform_5(%arg0: i32) -> (i32, i32) {
    %c0_i32 = arith.constant 0 : i32
    %c0_i32_0 = arith.constant 0 : i32
    %c0_i32_1 = arith.constant 0 : i32
    return %c0_i32, %c0_i32_0 : i32, i32
  }
  func.func @transform_6(%arg0: i32) -> (i32, i32) {
    %c0_i32 = arith.constant 0 : i32
    %c0_i32_0 = arith.constant 0 : i32
    %c0_i32_1 = arith.constant 0 : i32
    return %c0_i32, %c0_i32_0 : i32, i32
  }
  func.func @transform_7(%arg0: i32) -> (i32, i32) {
    %c0_i32 = arith.constant 0 : i32
    %c0_i32_0 = arith.constant 0 : i32
    %c0_i32_1 = arith.constant 0 : i32
    return %c0_i32, %c0_i32_0 : i32, i32
  }
  func.func @transform_8(%arg0: i32) -> (i32, i32) {
    %c0_i32 = arith.constant 0 : i32
    %c0_i32_0 = arith.constant 0 : i32
    %c0_i32_1 = arith.constant 0 : i32
    return %c0_i32, %c0_i32_0 : i32, i32
  }
  func.func @transform_9(%arg0: i32) -> (i32, i32) {
    %c0_i32 = arith.constant 0 : i32
    %c0_i32_0 = arith.constant 0 : i32
    %c0_i32_1 = arith.constant 0 : i32
    return %c0_i32, %c0_i32_0 : i32, i32
  }
  func.func @transform_10(%arg0: i32) -> (i32, i32) {
    %c0_i32 = arith.constant 0 : i32
    %c0_i32_0 = arith.constant 0 : i32
    %c0_i32_1 = arith.constant 0 : i32
    return %c0_i32, %c0_i32_0 : i32, i32
  }
  func.func @transform_11(%arg0: i32) -> (i32, i32) {
    %c0_i32 = arith.constant 0 : i32
    %c0_i32_0 = arith.constant 0 : i32
    %c0_i32_1 = arith.constant 0 : i32
    return %c0_i32, %c0_i32_0 : i32, i32
  }
  func.func @transform_12(%arg0: i32) -> (i32, i32) {
    %c0_i32 = arith.constant 0 : i32
    %c0_i32_0 = arith.constant 0 : i32
    %c0_i32_1 = arith.constant 0 : i32
    return %c0_i32, %c0_i32_0 : i32, i32
  }
  func.func @transform_13(%arg0: i32) -> (i32, i32) {
    %c0_i32 = arith.constant 0 : i32
    %c0_i32_0 = arith.constant 0 : i32
    %c0_i32_1 = arith.constant 0 : i32
    return %c0_i32, %c0_i32_0 : i32, i32
  }
  func.func @transform_14(%arg0: i32) -> (i32, i32) {
    %c0_i32 = arith.constant 0 : i32
    %c0_i32_0 = arith.constant 0 : i32
    %c0_i32_1 = arith.constant 0 : i32
    return %c0_i32, %c0_i32_0 : i32, i32
  }
}

</mosaic_0001>

<llo_original>
// kernel: tpu_custom_call.1
$region0: #{tpu_custom_call.1}
  #allocation0 [shape = 'u32[]', space=smem, size = 0x4, offset = 0x4, fixed_abs, tag = 'smem constant byte address 0x4 - core index']
  #allocation1 [shape = 'u32[144,128]{1,0:T(1,128)}', space=vmem, size = 0x12000, scoped, tag = 'internal scratch']
  %s0 = inlined_call_operand.vmem [shape: f32[256,3], index: 0, kind: input, shape index: {}]
  %s1 = inlined_call_operand.vmem [shape: f32[256,3], index: 1, kind: input, shape index: {}]
  %s2 = inlined_call_operand.vmem [shape: f32[3,16], index: 2, kind: input, shape index: {}]
  %s3 = inlined_call_operand.vmem [shape: f32[1,16], index: 3, kind: input, shape index: {}]
  %s4 = inlined_call_operand.vmem [shape: f32[16,16], index: 4, kind: input, shape index: {}]
  %s5 = inlined_call_operand.vmem [shape: f32[1,16], index: 5, kind: input, shape index: {}]
  %s6 = inlined_call_operand.vmem [shape: f32[16,32], index: 6, kind: input, shape index: {}]
  %s7 = inlined_call_operand.vmem [shape: f32[1,32], index: 7, kind: input, shape index: {}]
  %s8 = inlined_call_operand.vmem [shape: f32[3,16], index: 8, kind: input, shape index: {}]
  %s9 = inlined_call_operand.vmem [shape: f32[1,16], index: 9, kind: input, shape index: {}]
  %s10 = inlined_call_operand.vmem [shape: f32[16,16], index: 10, kind: input, shape index: {}]
  %s11 = inlined_call_operand.vmem [shape: f32[1,16], index: 11, kind: input, shape index: {}]
  %s12 = inlined_call_operand.vmem [shape: f32[16,32], index: 12, kind: input, shape index: {}]
  %s13 = inlined_call_operand.vmem [shape: f32[1,32], index: 13, kind: input, shape index: {}]
  %s14 = inlined_call_operand.hbm [shape: f32[32,64], index: 14, kind: output, shape index: {}]
  %s15 = sld [smem:[#allocation0]]
  $region66: #{tpu_custom_call.1} parent=0
    _
  %s17 = ssub.s32 1, %s15
  %s18 = scalar_select 0, %s17, %s15
  $region1: #{tpu_custom_call.1} parent=0
    #allocation2 [shape = 'u8[16384]{0}', space=vmem, size = 0x4000, scoped, tag = 'output window, operand 0, single buffered']
    #allocation3 [shape = 's32[1]{0}', space=sflag, size = 0x4, scoped, tag = 'scoped memory for tpu_custom_call.1']
    %19 = vsyncpa [#allocation3], 0
    // Predicated region
    $region2: #{tpu_custom_call.1} parent=1 // pred_check
      _
    $region3: #{tpu_custom_call.1} parent=1 // pred_check_branch
      %21 = sbr.rel (0) target = $region5
    $region4: #{tpu_custom_call.1} parent=1 // pred_region
      _
    $region5: #{tpu_custom_call.1} parent=1 // pred_fallthru
      _
    // Predicated region
    $region6: #{tpu_custom_call.1} parent=1 // pred_check
      _
    $region7: #{tpu_custom_call.1} parent=1 // pred_check_branch
      %23 = sbr.rel (0) target = $region9
    $region8: #{tpu_custom_call.1} parent=1 // pred_region
      _
    $region9: #{tpu_custom_call.1} parent=1 // pred_fallthru
      _
    // Predicated region
    $region10: #{tpu_custom_call.1} parent=1 // pred_check
      _
    $region11: #{tpu_custom_call.1} parent=1 // pred_check_branch
      %25 = sbr.rel (0) target = $region13
    $region12: #{tpu_custom_call.1} parent=1 // pred_region
      _
    $region13: #{tpu_custom_call.1} parent=1 // pred_fallthru
      _
    // Predicated region
    $region14: #{tpu_custom_call.1} parent=1 // pred_check
      _
    $region15: #{tpu_custom_call.1} parent=1 // pred_check_branch
      %27 = sbr.rel (0) target = $region17
    $region16: #{tpu_custom_call.1} parent=1 // pred_region
      _
    $region17: #{tpu_custom_call.1} parent=1 // pred_fallthru
      _
    // Predicated region
    $region18: #{tpu_custom_call.1} parent=1 // pred_check
      _
    $region19: #{tpu_custom_call.1} parent=1 // pred_check_branch
      %29 = sbr.rel (0) target = $region21
    $region20: #{tpu_custom_call.1} parent=1 // pred_region
      _
    $region21: #{tpu_custom_call.1} parent=1 // pred_fallthru
      _
    // Predicated region
    $region22: #{tpu_custom_call.1} parent=1 // pred_check
      _
    $region23: #{tpu_custom_call.1} parent=1 // pred_check_branch
      %31 = sbr.rel (0) target = $region25
    $region24: #{tpu_custom_call.1} parent=1 // pred_region
      _
    $region25: #{tpu_custom_call.1} parent=1 // pred_fallthru
      _
    // Predicated region
    $region26: #{tpu_custom_call.1} parent=1 // pred_check
      _
    $region27: #{tpu_custom_call.1} parent=1 // pred_check_branch
      %33 = sbr.rel (0) target = $region29
    $region28: #{tpu_custom_call.1} parent=1 // pred_region
      _
    $region29: #{tpu_custom_call.1} parent=1 // pred_fallthru
      _
    // Predicated region
    $region30: #{tpu_custom_call.1} parent=1 // pred_check
      _
    $region31: #{tpu_custom_call.1} parent=1 // pred_check_branch
      %35 = sbr.rel (0) target = $region33
    $region32: #{tpu_custom_call.1} parent=1 // pred_region
      _
    $region33: #{tpu_custom_call.1} parent=1 // pred_fallthru
      _
    // Predicated region
    $region34: #{tpu_custom_call.1} parent=1 // pred_check
      _
    $region35: #{tpu_custom_call.1} parent=1 // pred_check_branch
      %37 = sbr.rel (0) target = $region37
    $region36: #{tpu_custom_call.1} parent=1 // pred_region
      _
    $region37: #{tpu_custom_call.1} parent=1 // pred_fallthru
      _
    // Predicated region
    $region38: #{tpu_custom_call.1} parent=1 // pred_check
      _
    $region39: #{tpu_custom_call.1} parent=1 // pred_check_branch
      %39 = sbr.rel (0) target = $region41
    $region40: #{tpu_custom_call.1} parent=1 // pred_region
      _
    $region41: #{tpu_custom_call.1} parent=1 // pred_fallthru
      _
    // Predicated region
    $region42: #{tpu_custom_call.1} parent=1 // pred_check
      _
    $region43: #{tpu_custom_call.1} parent=1 // pred_check_branch
      %41 = sbr.rel (0) target = $region45
    $region44: #{tpu_custom_call.1} parent=1 // pred_region
      _
    $region45: #{tpu_custom_call.1} parent=1 // pred_fallthru
      _
    // Predicated region
    $region46: #{tpu_custom_call.1} parent=1 // pred_check
      _
    $region47: #{tpu_custom_call.1} parent=1 // pred_check_branch
      %43 = sbr.rel (0) target = $region49
    $region48: #{tpu_custom_call.1} parent=1 // pred_region
      _
    $region49: #{tpu_custom_call.1} parent=1 // pred_fallthru
      _
    // Predicated region
    $region50: #{tpu_custom_call.1} parent=1 // pred_check
      _
    $region51: #{tpu_custom_call.1} parent=1 // pred_check_branch
      %45 = sbr.rel (0) target = $region53
    $region52: #{tpu_custom_call.1} parent=1 // pred_region
      _
    $region53: #{tpu_custom_call.1} parent=1 // pred_fallthru
      _
    // Predicated region
    $region54: #{tpu_custom_call.1} parent=1 // pred_check
      _
    $region55: #{tpu_custom_call.1} parent=1 // pred_check_branch
      %47 = sbr.rel (0) target = $region57
    $region56: #{tpu_custom_call.1} parent=1 // pred_region
      _
    $region57: #{tpu_custom_call.1} parent=1 // pred_fallthru
      _
    %v48 = vld [vmem:[%s0] sm:$0xff]
    %v49 = vld [vmem:[%s0 + $0x8] sm:$0xff]
    %v50 = vld [vmem:[%s0 + $0x10] sm:$0xff]
    %v51 = vld [vmem:[%s0 + $0x18] sm:$0xff]
    %v52 = vld [vmem:[%s0 + $0x20] sm:$0xff]
    %v53 = vld [vmem:[%s0 + $0x28] sm:$0xff]
    %v54 = vld [vmem:[%s0 + $0x30] sm:$0xff]
    %v55 = vld [vmem:[%s0 + $0x38] sm:$0xff]
    %v56 = vld [vmem:[%s0 + $0x40] sm:$0xff]
    %v57 = vld [vmem:[%s0 + $0x48] sm:$0xff]
    %v58 = vld [vmem:[%s0 + $0x50] sm:$0xff]
    %v59 = vld [vmem:[%s0 + $0x58] sm:$0xff]
    %v60 = vld [vmem:[%s0 + $0x60] sm:$0xff]
    %v61 = vld [vmem:[%s0 + $0x68] sm:$0xff]
    %v62 = vld [vmem:[%s0 + $0x70] sm:$0xff]
    %v63 = vld [vmem:[%s0 + $0x78] sm:$0xff]
    %v64 = vld [vmem:[%s0 + $0x80] sm:$0xff]
    %v65 = vld [vmem:[%s0 + $0x88] sm:$0xff]
    %v66 = vld [vmem:[%s0 + $0x90] sm:$0xff]
    %v67 = vld [vmem:[%s0 + $0x98] sm:$0xff]
    %v68 = vld [vmem:[%s0 + $0xa0] sm:$0xff]
    %v69 = vld [vmem:[%s0 + $0xa8] sm:$0xff]
    %v70 = vld [vmem:[%s0 + $0xb0] sm:$0xff]
    %v71 = vld [vmem:[%s0 + $0xb8] sm:$0xff]
    %v72 = vld [vmem:[%s0 + $0xc0] sm:$0xff]
    %v73 = vld [vmem:[%s0 + $0xc8] sm:$0xff]
    %v74 = vld [vmem:[%s0 + $0xd0] sm:$0xff]
    %v75 = vld [vmem:[%s0 + $0xd8] sm:$0xff]
    %v76 = vld [vmem:[%s0 + $0xe0] sm:$0xff]
    %v77 = vld [vmem:[%s0 + $0xe8] sm:$0xff]
    %v78 = vld [vmem:[%s0 + $0xf0] sm:$0xff]
    %v79 = vld [vmem:[%s0 + $0xf8] sm:$0xff]
    %v80 = vld [vmem:[%s2] sm:$0x7]
    %v81 = vld [vmem:[%s3] sm:$0x1]
    %83 = vset.pattern.permute.xlu0 0
    %84 = vperm.xlu0 %83, %v48
    %v85 = vpop.permute.xlu0 %84
    %88 = vset.pattern.permute.xlu0 0
    %89 = vperm.xlu0 %88, %v49
    %v90 = vpop.permute.xlu0 %89
    %93 = vset.pattern.permute.xlu0 0
    %94 = vperm.xlu0 %93, %v50
    %v95 = vpop.permute.xlu0 %94
    %98 = vset.pattern.permute.xlu0 0
    %99 = vperm.xlu0 %98, %v51
    %v100 = vpop.permute.xlu0 %99
    %103 = vset.pattern.permute.xlu0 0
    %104 = vperm.xlu0 %103, %v52
    %v105 = vpop.permute.xlu0 %104
    %108 = vset.pattern.permute.xlu0 0
    %109 = vperm.xlu0 %108, %v53
    %v110 = vpop.permute.xlu0 %109
    %113 = vset.pattern.permute.xlu0 0
    %114 = vperm.xlu0 %113, %v54
    %v115 = vpop.permute.xlu0 %114
    %118 = vset.pattern.permute.xlu0 0
    %119 = vperm.xlu0 %118, %v55
    %v120 = vpop.permute.xlu0 %119
    %123 = vset.pattern.permute.xlu0 0
    %124 = vperm.xlu0 %123, %v56
    %v125 = vpop.permute.xlu0 %124
    %128 = vset.pattern.permute.xlu0 0
    %129 = vperm.xlu0 %128, %v57
    %v130 = vpop.permute.xlu0 %129
    %133 = vset.pattern.permute.xlu0 0
    %134 = vperm.xlu0 %133, %v58
    %v135 = vpop.permute.xlu0 %134
    %138 = vset.pattern.permute.xlu0 0
    %139 = vperm.xlu0 %138, %v59
    %v140 = vpop.permute.xlu0 %139
    %143 = vset.pattern.permute.xlu0 0
    %144 = vperm.xlu0 %143, %v60
    %v145 = vpop.permute.xlu0 %144
    %148 = vset.pattern.permute.xlu0 0
    %149 = vperm.xlu0 %148, %v61
    %v150 = vpop.permute.xlu0 %149
    %153 = vset.pattern.permute.xlu0 0
    %154 = vperm.xlu0 %153, %v62
    %v155 = vpop.permute.xlu0 %154
    %158 = vset.pattern.permute.xlu0 0
    %159 = vperm.xlu0 %158, %v63
    %v160 = vpop.permute.xlu0 %159
    %163 = vset.pattern.permute.xlu0 0
    %164 = vperm.xlu0 %163, %v64
    %v165 = vpop.permute.xlu0 %164
    %168 = vset.pattern.permute.xlu0 0
    %169 = vperm.xlu0 %168, %v65
    %v170 = vpop.permute.xlu0 %169
    %173 = vset.pattern.permute.xlu0 0
    %174 = vperm.xlu0 %173, %v66
    %v175 = vpop.permute.xlu0 %174
    %178 = vset.pattern.permute.xlu0 0
    %179 = vperm.xlu0 %178, %v67
    %v180 = vpop.permute.xlu0 %179
    %183 = vset.pattern.permute.xlu0 0
    %184 = vperm.xlu0 %183, %v68
    %v185 = vpop.permute.xlu0 %184
    %188 = vset.pattern.permute.xlu0 0
    %189 = vperm.xlu0 %188, %v69
    %v190 = vpop.permute.xlu0 %189
    %193 = vset.pattern.permute.xlu0 0
    %194 = vperm.xlu0 %193, %v70
    %v195 = vpop.permute.xlu0 %194
    %198 = vset.pattern.permute.xlu0 0
    %199 = vperm.xlu0 %198, %v71
    %v200 = vpop.permute.xlu0 %199
    %203 = vset.pattern.permute.xlu0 0
    %204 = vperm.xlu0 %203, %v72
    %v205 = vpop.permute.xlu0 %204
    %208 = vset.pattern.permute.xlu0 0
    %209 = vperm.xlu0 %208, %v73
    %v210 = vpop.permute.xlu0 %209
    %213 = vset.pattern.permute.xlu0 0
    %214 = vperm.xlu0 %213, %v74
    %v215 = vpop.permute.xlu0 %214
    %218 = vset.pattern.permute.xlu0 0
    %219 = vperm.xlu0 %218, %v75
    %v220 = vpop.permute.xlu0 %219
    %223 = vset.pattern.permute.xlu0 0
    %224 = vperm.xlu0 %223, %v76
    %v225 = vpop.permute.xlu0 %224
    %228 = vset.pattern.permute.xlu0 0
    %229 = vperm.xlu0 %228, %v77
    %v230 = vpop.permute.xlu0 %229
    %233 = vset.pattern.permute.xlu0 0
    %234 = vperm.xlu0 %233, %v78
    %v235 = vpop.permute.xlu0 %234
    %238 = vset.pattern.permute.xlu0 0
    %239 = vperm.xlu0 %238, %v79
    %v240 = vpop.permute.xlu0 %239
    %v242 = vlaneseq
    %v243 = vshrl.u32 %v242, 7
    %v244 = vsub.s32 0, %v243
    %v245 = vrot.slane %v80, %v244
    %v246 = vmul.f32 %v85, %v245
    %v247 = vmul.f32 %v90, %v245
    %v248 = vmul.f32 %v95, %v245
    %v249 = vmul.f32 %v100, %v245
    %v250 = vmul.f32 %v105, %v245
    %v251 = vmul.f32 %v110, %v245
    %v252 = vmul.f32 %v115, %v245
    %v253 = vmul.f32 %v120, %v245
    %v254 = vmul.f32 %v125, %v245
    %v255 = vmul.f32 %v130, %v245
    %v256 = vmul.f32 %v135, %v245
    %v257 = vmul.f32 %v140, %v245
    %v258 = vmul.f32 %v145, %v245
    %v259 = vmul.f32 %v150, %v245
    %v260 = vmul.f32 %v155, %v245
    %v261 = vmul.f32 %v160, %v245
    %v262 = vmul.f32 %v165, %v245
    %v263 = vmul.f32 %v170, %v245
    %v264 = vmul.f32 %v175, %v245
    %v265 = vmul.f32 %v180, %v245
    %v266 = vmul.f32 %v185, %v245
    %v267 = vmul.f32 %v190, %v245
    %v268 = vmul.f32 %v195, %v245
    %v269 = vmul.f32 %v200, %v245
    %v270 = vmul.f32 %v205, %v245
    %v271 = vmul.f32 %v210, %v245
    %v272 = vmul.f32 %v215, %v245
    %v273 = vmul.f32 %v220, %v245
    %v274 = vmul.f32 %v225, %v245
    %v275 = vmul.f32 %v230, %v245
    %v276 = vmul.f32 %v235, %v245
    %v277 = vmul.f32 %v240, %v245
    %278 = vset.pattern.permute.xlu0 1
    %279 = vperm.xlu0 %278, %v48
    %v280 = vpop.permute.xlu0 %279
    %282 = vset.pattern.permute.xlu0 1
    %283 = vperm.xlu0 %282, %v49
    %v284 = vpop.permute.xlu0 %283
    %286 = vset.pattern.permute.xlu0 1
    %287 = vperm.xlu0 %286, %v50
    %v288 = vpop.permute.xlu0 %287
    %290 = vset.pattern.permute.xlu0 1
    %291 = vperm.xlu0 %290, %v51
    %v292 = vpop.permute.xlu0 %291
    %294 = vset.pattern.permute.xlu0 1
    %295 = vperm.xlu0 %294, %v52
    %v296 = vpop.permute.xlu0 %295
    %298 = vset.pattern.permute.xlu0 1
    %299 = vperm.xlu0 %298, %v53
    %v300 = vpop.permute.xlu0 %299
    %302 = vset.pattern.permute.xlu0 1
    %303 = vperm.xlu0 %302, %v54
    %v304 = vpop.permute.xlu0 %303
    %306 = vset.pattern.permute.xlu0 1
    %307 = vperm.xlu0 %306, %v55
    %v308 = vpop.permute.xlu0 %307
    %310 = vset.pattern.permute.xlu0 1
    %311 = vperm.xlu0 %310, %v56
    %v312 = vpop.permute.xlu0 %311
    %314 = vset.pattern.permute.xlu0 1
    %315 = vperm.xlu0 %314, %v57
    %v316 = vpop.permute.xlu0 %315
    %318 = vset.pattern.permute.xlu0 1
    %319 = vperm.xlu0 %318, %v58
    %v320 = vpop.permute.xlu0 %319
    %322 = vset.pattern.permute.xlu0 1
    %323 = vperm.xlu0 %322, %v59
    %v324 = vpop.permute.xlu0 %323
    %326 = vset.pattern.permute.xlu0 1
    %327 = vperm.xlu0 %326, %v60
    %v328 = vpop.permute.xlu0 %327
    %330 = vset.pattern.permute.xlu0 1
    %331 = vperm.xlu0 %330, %v61
    %v332 = vpop.permute.xlu0 %331
    %334 = vset.pattern.permute.xlu0 1
    %335 = vperm.xlu0 %334, %v62
    %v336 = vpop.permute.xlu0 %335
    %338 = vset.pattern.permute.xlu0 1
    %339 = vperm.xlu0 %338, %v63
    %v340 = vpop.permute.xlu0 %339
    %342 = vset.pattern.permute.xlu0 1
    %343 = vperm.xlu0 %342, %v64
    %v344 = vpop.permute.xlu0 %343
    %346 = vset.pattern.permute.xlu0 1
    %347 = vperm.xlu0 %346, %v65
    %v348 = vpop.permute.xlu0 %347
    %350 = vset.pattern.permute.xlu0 1
    %351 = vperm.xlu0 %350, %v66
    %v352 = vpop.permute.xlu0 %351
    %354 = vset.pattern.permute.xlu0 1
    %355 = vperm.xlu0 %354, %v67
    %v356 = vpop.permute.xlu0 %355
    %358 = vset.pattern.permute.xlu0 1
    %359 = vperm.xlu0 %358, %v68
    %v360 = vpop.permute.xlu0 %359
    %362 = vset.pattern.permute.xlu0 1
    %363 = vperm.xlu0 %362, %v69
    %v364 = vpop.permute.xlu0 %363
    %366 = vset.pattern.permute.xlu0 1
    %367 = vperm.xlu0 %366, %v70
    %v368 = vpop.permute.xlu0 %367
    %370 = vset.pattern.permute.xlu0 1
    %371 = vperm.xlu0 %370, %v71
    %v372 = vpop.permute.xlu0 %371
    %374 = vset.pattern.permute.xlu0 1
    %375 = vperm.xlu0 %374, %v72
    %v376 = vpop.permute.xlu0 %375
    %378 = vset.pattern.permute.xlu0 1
    %379 = vperm.xlu0 %378, %v73
    %v380 = vpop.permute.xlu0 %379
    %382 = vset.pattern.permute.xlu0 1
    %383 = vperm.xlu0 %382, %v74
    %v384 = vpop.permute.xlu0 %383
    %386 = vset.pattern.permute.xlu0 1
    %387 = vperm.xlu0 %386, %v75
    %v388 = vpop.permute.xlu0 %387
    %390 = vset.pattern.permute.xlu0 1
    %391 = vperm.xlu0 %390, %v76
    %v392 = vpop.permute.xlu0 %391
    %394 = vset.pattern.permute.xlu0 1
    %395 = vperm.xlu0 %394, %v77
    %v396 = vpop.permute.xlu0 %395
    %398 = vset.pattern.permute.xlu0 1
    %399 = vperm.xlu0 %398, %v78
    %v400 = vpop.permute.xlu0 %399
    %402 = vset.pattern.permute.xlu0 1
    %403 = vperm.xlu0 %402, %v79
    %v404 = vpop.permute.xlu0 %403
    %v406 = vlaneseq
    %v407 = vshrl.u32 %v406, 7
    %v408 = vsub.s32 1, %v407
    %v409 = vrot.slane %v80, %v408
    %v410 = vmul.f32 %v280, %v409
    %v411 = vmul.f32 %v284, %v409
    %v412 = vmul.f32 %v288, %v409
    %v413 = vmul.f32 %v292, %v409
    %v414 = vmul.f32 %v296, %v409
    %v415 = vmul.f32 %v300, %v409
    %v416 = vmul.f32 %v304, %v409
    %v417 = vmul.f32 %v308, %v409
    %v418 = vmul.f32 %v312, %v409
    %v419 = vmul.f32 %v316, %v409
    %v420 = vmul.f32 %v320, %v409
    %v421 = vmul.f32 %v324, %v409
    %v422 = vmul.f32 %v328, %v409
    %v423 = vmul.f32 %v332, %v409
    %v424 = vmul.f32 %v336, %v409
    %v425 = vmul.f32 %v340, %v409
    %v426 = vmul.f32 %v344, %v409
    %v427 = vmul.f32 %v348, %v409
    %v428 = vmul.f32 %v352, %v409
    %v429 = vmul.f32 %v356, %v409
    %v430 = vmul.f32 %v360, %v409
    %v431 = vmul.f32 %v364, %v409
    %v432 = vmul.f32 %v368, %v409
    %v433 = vmul.f32 %v372, %v409
    %v434 = vmul.f32 %v376, %v409
    %v435 = vmul.f32 %v380, %v409
    %v436 = vmul.f32 %v384, %v409
    %v437 = vmul.f32 %v388, %v409
    %v438 = vmul.f32 %v392, %v409
    %v439 = vmul.f32 %v396, %v409
    %v440 = vmul.f32 %v400, %v409
    %v441 = vmul.f32 %v404, %v409
    %v442 = vadd.f32 %v246, %v410
    %v443 = vadd.f32 %v247, %v411
    %v444 = vadd.f32 %v248, %v412
    %v445 = vadd.f32 %v249, %v413
    %v446 = vadd.f32 %v250, %v414
    %v447 = vadd.f32 %v251, %v415
    %v448 = vadd.f32 %v252, %v416
    %v449 = vadd.f32 %v253, %v417
    %v450 = vadd.f32 %v254, %v418
    %v451 = vadd.f32 %v255, %v419
    %v452 = vadd.f32 %v256, %v420
    %v453 = vadd.f32 %v257, %v421
    %v454 = vadd.f32 %v258, %v422
    %v455 = vadd.f32 %v259, %v423
    %v456 = vadd.f32 %v260, %v424
    %v457 = vadd.f32 %v261, %v425
    %v458 = vadd.f32 %v262, %v426
    %v459 = vadd.f32 %v263, %v427
    %v460 = vadd.f32 %v264, %v428
    %v461 = vadd.f32 %v265, %v429
    %v462 = vadd.f32 %v266, %v430
    %v463 = vadd.f32 %v267, %v431
    %v464 = vadd.f32 %v268, %v432
    %v465 = vadd.f32 %v269, %v433
    %v466 = vadd.f32 %v270, %v434
    %v467 = vadd.f32 %v271, %v435
    %v468 = vadd.f32 %v272, %v436
    %v469 = vadd.f32 %v273, %v437
    %v470 = vadd.f32 %v274, %v438
    %v471 = vadd.f32 %v275, %v439
    %v472 = vadd.f32 %v276, %v440
    %v473 = vadd.f32 %v277, %v441
    %474 = vset.pattern.permute.xlu0 2
    %475 = vperm.xlu0 %474, %v48
    %v476 = vpop.permute.xlu0 %475
    %478 = vset.pattern.permute.xlu0 2
    %479 = vperm.xlu0 %478, %v49
    %v480 = vpop.permute.xlu0 %479
    %482 = vset.pattern.permute.xlu0 2
    %483 = vperm.xlu0 %482, %v50
    %v484 = vpop.permute.xlu0 %483
    %486 = vset.pattern.permute.xlu0 2
    %487 = vperm.xlu0 %486, %v51
    %v488 = vpop.permute.xlu0 %487
    %490 = vset.pattern.permute.xlu0 2
    %491 = vperm.xlu0 %490, %v52
    %v492 = vpop.permute.xlu0 %491
    %494 = vset.pattern.permute.xlu0 2
    %495 = vperm.xlu0 %494, %v53
    %v496 = vpop.permute.xlu0 %495
    %498 = vset.pattern.permute.xlu0 2
    %499 = vperm.xlu0 %498, %v54
    %v500 = vpop.permute.xlu0 %499
    %502 = vset.pattern.permute.xlu0 2
    %503 = vperm.xlu0 %502, %v55
    %v504 = vpop.permute.xlu0 %503
    %506 = vset.pattern.permute.xlu0 2
    %507 = vperm.xlu0 %506, %v56
    %v508 = vpop.permute.xlu0 %507
    %510 = vset.pattern.permute.xlu0 2
    %511 = vperm.xlu0 %510, %v57
    %v512 = vpop.permute.xlu0 %511
    %514 = vset.pattern.permute.xlu0 2
    %515 = vperm.xlu0 %514, %v58
    %v516 = vpop.permute.xlu0 %515
    %518 = vset.pattern.permute.xlu0 2
    %519 = vperm.xlu0 %518, %v59
    %v520 = vpop.permute.xlu0 %519
    %522 = vset.pattern.permute.xlu0 2
    %523 = vperm.xlu0 %522, %v60
    %v524 = vpop.permute.xlu0 %523
    %526 = vset.pattern.permute.xlu0 2
    %527 = vperm.xlu0 %526, %v61
    %v528 = vpop.permute.xlu0 %527
    %530 = vset.pattern.permute.xlu0 2
    %531 = vperm.xlu0 %530, %v62
    %v532 = vpop.permute.xlu0 %531
    %534 = vset.pattern.permute.xlu0 2
    %535 = vperm.xlu0 %534, %v63
    %v536 = vpop.permute.xlu0 %535
    %538 = vset.pattern.permute.xlu0 2
    %539 = vperm.xlu0 %538, %v64
    %v540 = vpop.permute.xlu0 %539
    %542 = vset.pattern.permute.xlu0 2
    %543 = vperm.xlu0 %542, %v65
    %v544 = vpop.permute.xlu0 %543
    %546 = vset.pattern.permute.xlu0 2
    %547 = vperm.xlu0 %546, %v66
    %v548 = vpop.permute.xlu0 %547
    %550 = vset.pattern.permute.xlu0 2
    %551 = vperm.xlu0 %550, %v67
    %v552 = vpop.permute.xlu0 %551
    %554 = vset.pattern.permute.xlu0 2
    %555 = vperm.xlu0 %554, %v68
    %v556 = vpop.permute.xlu0 %555
    %558 = vset.pattern.permute.xlu0 2
    %559 = vperm.xlu0 %558, %v69
    %v560 = vpop.permute.xlu0 %559
    %562 = vset.pattern.permute.xlu0 2
    %563 = vperm.xlu0 %562, %v70
    %v564 = vpop.permute.xlu0 %563
    %566 = vset.pattern.permute.xlu0 2
    %567 = vperm.xlu0 %566, %v71
    %v568 = vpop.permute.xlu0 %567
    %570 = vset.pattern.permute.xlu0 2
    %571 = vperm.xlu0 %570, %v72
    %v572 = vpop.permute.xlu0 %571
    %574 = vset.pattern.permute.xlu0 2
    %575 = vperm.xlu0 %574, %v73
    %v576 = vpop.permute.xlu0 %575
    %578 = vset.pattern.permute.xlu0 2
    %579 = vperm.xlu0 %578, %v74
    %v580 = vpop.permute.xlu0 %579
    %582 = vset.pattern.permute.xlu0 2
    %583 = vperm.xlu0 %582, %v75
    %v584 = vpop.permute.xlu0 %583
    %586 = vset.pattern.permute.xlu0 2
    %587 = vperm.xlu0 %586, %v76
    %v588 = vpop.permute.xlu0 %587
    %590 = vset.pattern.permute.xlu0 2
    %591 = vperm.xlu0 %590, %v77
    %v592 = vpop.permute.xlu0 %591
    %594 = vset.pattern.permute.xlu0 2
    %595 = vperm.xlu0 %594, %v78
    %v596 = vpop.permute.xlu0 %595
    %598 = vset.pattern.permute.xlu0 2
    %599 = vperm.xlu0 %598, %v79
    %v600 = vpop.permute.xlu0 %599
    %v602 = vlaneseq
    %v603 = vshrl.u32 %v602, 7
    %v604 = vsub.s32 2, %v603
    %v605 = vrot.slane %v80, %v604
    %v606 = vmul.f32 %v476, %v605
    %v607 = vmul.f32 %v480, %v605
    %v608 = vmul.f32 %v484, %v605
    %v609 = vmul.f32 %v488, %v605
    %v610 = vmul.f32 %v492, %v605
    %v611 = vmul.f32 %v496, %v605
    %v612 = vmul.f32 %v500, %v605
    %v613 = vmul.f32 %v504, %v605
    %v614 = vmul.f32 %v508, %v605
    %v615 = vmul.f32 %v512, %v605
    %v616 = vmul.f32 %v516, %v605
    %v617 = vmul.f32 %v520, %v605
    %v618 = vmul.f32 %v524, %v605
    %v619 = vmul.f32 %v528, %v605
    %v620 = vmul.f32 %v532, %v605
    %v621 = vmul.f32 %v536, %v605
    %v622 = vmul.f32 %v540, %v605
    %v623 = vmul.f32 %v544, %v605
    %v624 = vmul.f32 %v548, %v605
    %v625 = vmul.f32 %v552, %v605
    %v626 = vmul.f32 %v556, %v605
    %v627 = vmul.f32 %v560, %v605
    %v628 = vmul.f32 %v564, %v605
    %v629 = vmul.f32 %v568, %v605
    %v630 = vmul.f32 %v572, %v605
    %v631 = vmul.f32 %v576, %v605
    %v632 = vmul.f32 %v580, %v605
    %v633 = vmul.f32 %v584, %v605
    %v634 = vmul.f32 %v588, %v605
    %v635 = vmul.f32 %v592, %v605
    %v636 = vmul.f32 %v596, %v605
    %v637 = vmul.f32 %v600, %v605
    %v638 = vadd.f32 %v442, %v606
    %v639 = vadd.f32 %v443, %v607
    %v640 = vadd.f32 %v444, %v608
    %v641 = vadd.f32 %v445, %v609
    %v642 = vadd.f32 %v446, %v610
    %v643 = vadd.f32 %v447, %v611
    %v644 = vadd.f32 %v448, %v612
    %v645 = vadd.f32 %v449, %v613
    %v646 = vadd.f32 %v450, %v614
    %v647 = vadd.f32 %v451, %v615
    %v648 = vadd.f32 %v452, %v616
    %v649 = vadd.f32 %v453, %v617
    %v650 = vadd.f32 %v454, %v618
    %v651 = vadd.f32 %v455, %v619
    %v652 = vadd.f32 %v456, %v620
    %v653 = vadd.f32 %v457, %v621
    %v654 = vadd.f32 %v458, %v622
    %v655 = vadd.f32 %v459, %v623
    %v656 = vadd.f32 %v460, %v624
    %v657 = vadd.f32 %v461, %v625
    %v658 = vadd.f32 %v462, %v626
    %v659 = vadd.f32 %v463, %v627
    %v660 = vadd.f32 %v464, %v628
    %v661 = vadd.f32 %v465, %v629
    %v662 = vadd.f32 %v466, %v630
    %v663 = vadd.f32 %v467, %v631
    %v664 = vadd.f32 %v468, %v632
    %v665 = vadd.f32 %v469, %v633
    %v666 = vadd.f32 %v470, %v634
    %v667 = vadd.f32 %v471, %v635
    %v668 = vadd.f32 %v472, %v636
    %v669 = vadd.f32 %v473, %v637
    %v671 = vlaneseq
    %v672 = vshrl.u32 %v671, 7
    %v673 = vsub.s32 0, %v672
    %v674 = vrot.slane %v81, %v673
    %v676 = vadd.f32 %v638, %v674
    %v677 = vadd.f32 %v639, %v674
    %v678 = vadd.f32 %v640, %v674
    %v679 = vadd.f32 %v641, %v674
    %v680 = vadd.f32 %v642, %v674
    %v681 = vadd.f32 %v643, %v674
    %v682 = vadd.f32 %v644, %v674
    %v683 = vadd.f32 %v645, %v674
    %v684 = vadd.f32 %v646, %v674
    %v685 = vadd.f32 %v647, %v674
    %v686 = vadd.f32 %v648, %v674
    %v687 = vadd.f32 %v649, %v674
    %v688 = vadd.f32 %v650, %v674
    %v689 = vadd.f32 %v651, %v674
    %v690 = vadd.f32 %v652, %v674
    %v691 = vadd.f32 %v653, %v674
    %v692 = vadd.f32 %v654, %v674
    %v693 = vadd.f32 %v655, %v674
    %v694 = vadd.f32 %v656, %v674
    %v695 = vadd.f32 %v657, %v674
    %v696 = vadd.f32 %v658, %v674
    %v697 = vadd.f32 %v659, %v674
    %v698 = vadd.f32 %v660, %v674
    %v699 = vadd.f32 %v661, %v674
    %v700 = vadd.f32 %v662, %v674
    %v701 = vadd.f32 %v663, %v674
    %v702 = vadd.f32 %v664, %v674
    %v703 = vadd.f32 %v665, %v674
    %v704 = vadd.f32 %v666, %v674
    %v705 = vadd.f32 %v667, %v674
    %v706 = vadd.f32 %v668, %v674
    %v707 = vadd.f32 %v669, %v674
    %v708 = vmax.f32 %v676, 0.0
    %v709 = vmax.f32 %v677, 0.0
    %v710 = vmax.f32 %v678, 0.0
    %v711 = vmax.f32 %v679, 0.0
    %v712 = vmax.f32 %v680, 0.0
    %v713 = vmax.f32 %v681, 0.0
    %v714 = vmax.f32 %v682, 0.0
    %v715 = vmax.f32 %v683, 0.0
    %v716 = vmax.f32 %v684, 0.0
    %v717 = vmax.f32 %v685, 0.0
    %v718 = vmax.f32 %v686, 0.0
    %v719 = vmax.f32 %v687, 0.0
    %v720 = vmax.f32 %v688, 0.0
    %v721 = vmax.f32 %v689, 0.0
    %v722 = vmax.f32 %v690, 0.0
    %v723 = vmax.f32 %v691, 0.0
    %v724 = vmax.f32 %v692, 0.0
    %v725 = vmax.f32 %v693, 0.0
    %v726 = vmax.f32 %v694, 0.0
    %v727 = vmax.f32 %v695, 0.0
    %v728 = vmax.f32 %v696, 0.0
    %v729 = vmax.f32 %v697, 0.0
    %v730 = vmax.f32 %v698, 0.0
    %v731 = vmax.f32 %v699, 0.0
    %v732 = vmax.f32 %v700, 0.0
    %v733 = vmax.f32 %v701, 0.0
    %v734 = vmax.f32 %v702, 0.0
    %v735 = vmax.f32 %v703, 0.0
    %v736 = vmax.f32 %v704, 0.0
    %v737 = vmax.f32 %v705, 0.0
    %v738 = vmax.f32 %v706, 0.0
    %v739 = vmax.f32 %v707, 0.0
    %v740 = vld [vmem:[%s4] sm:$0xff]
    %v741 = vld [vmem:[%s4 + $0x8] sm:$0xff]
    %v742 = vld [vmem:[%s5] sm:$0x1]
    %v744 = vlaneseq
    %v745 = vshrl.u32 %v744, 7
    %v746 = vsub.s32 0, %v745
    %v747 = vrot.slane %v742, %v746
    %vm749 = vcmask 130048
    %v751 = vsel %vm749, %v708, 0
    %v754 = vsel %vm749, %v709, 0
    %v757 = vsel %vm749, %v710, 0
    %v760 = vsel %vm749, %v711, 0
    %v763 = vsel %vm749, %v712, 0
    %v766 = vsel %vm749, %v713, 0
    %v769 = vsel %vm749, %v714, 0
    %v772 = vsel %vm749, %v715, 0
    %v775 = vsel %vm749, %v716, 0
    %v778 = vsel %vm749, %v717, 0
    %v781 = vsel %vm749, %v718, 0
    %v784 = vsel %vm749, %v719, 0
    %v787 = vsel %vm749, %v720, 0
    %v790 = vsel %vm749, %v721, 0
    %v793 = vsel %vm749, %v722, 0
    %v796 = vsel %vm749, %v723, 0
    %v799 = vsel %vm749, %v724, 0
    %v802 = vsel %vm749, %v725, 0
    %v805 = vsel %vm749, %v726, 0
    %v808 = vsel %vm749, %v727, 0
    %v811 = vsel %vm749, %v728, 0
    %v814 = vsel %vm749, %v729, 0
    %v817 = vsel %vm749, %v730, 0
    %v820 = vsel %vm749, %v731, 0
    %v823 = vsel %vm749, %v732, 0
    %v826 = vsel %vm749, %v733, 0
    %v829 = vsel %vm749, %v734, 0
    %v832 = vsel %vm749, %v735, 0
    %v835 = vsel %vm749, %v736, 0
    %v838 = vsel %vm749, %v737, 0
    %v841 = vsel %vm749, %v738, 0
    %v844 = vsel %vm749, %v739, 0
    %846 = vmatprep.subr.mxu0 0.0
    %847 = vmatpush1.msra.mxu0 0.0
    %848 = vmatprep.subr.mxu0 0.0
    %849 = vmatpush1.msra.mxu0 0.0
    %850 = vmatprep.subr.mxu0 0.0
    %851 = vmatpush1.msra.mxu0 0.0
    %852 = vmatprep.subr.mxu0 0.0
    %853 = vmatpush1.msra.mxu0 0.0
    %854 = vmatprep.subr.mxu0 0.0
    %855 = vmatpush1.msra.mxu0 0.0
    %856 = vmatprep.subr.mxu0 0.0
    %857 = vmatpush1.msra.mxu0 0.0
    %858 = vmatprep.subr.mxu0 0.0
    %859 = vmatpush1.msra.mxu0 0.0
    %860 = vmatprep.subr.mxu0 0.0
    %861 = vmatpush1.msra.mxu0 0.0
    %862 = vmatprep.subr.mxu0 0.0
    %863 = vmatpush1.msra.mxu0 0.0
    %864 = vmatprep.subr.mxu0 0.0
    %865 = vmatpush1.msra.mxu0 0.0
    %866 = vmatprep.subr.mxu0 0.0
    %867 = vmatpush1.msra.mxu0 0.0
    %868 = vmatprep.subr.mxu0 0.0
    %869 = vmatpush1.msra.mxu0 0.0
    %870 = vmatprep.subr.mxu0 0.0
    %871 = vmatpush1.msra.mxu0 0.0
    %872 = vmatprep.subr.mxu0 0.0
    %873 = vmatpush1.msra.mxu0 0.0
    %874 = vmatprep.subr.mxu0 0.0
    %875 = vmatpush1.msra.mxu0 %v741
    %876 = vmatprep.subr.mxu0 0.0
    %877 = vmatpush1.msra.mxu0 %v740
    %878 = vmatprep.subr.mxu0 0.0
    %879 = vmatpush2.msra.mxu0 0.0
    %880 = vmatprep.subr.mxu0 0.0
    %881 = vmatpush2.msra.mxu0 0.0
    %882 = vmatprep.subr.mxu0 0.0
    %883 = vmatpush2.msra.mxu0 0.0
    %884 = vmatprep.subr.mxu0 0.0
    %885 = vmatpush2.msra.mxu0 0.0
    %886 = vmatprep.subr.mxu0 0.0
    %887 = vmatpush2.msra.mxu0 0.0
    %888 = vmatprep.subr.mxu0 0.0
    %889 = vmatpush2.msra.mxu0 0.0
    %890 = vmatprep.subr.mxu0 0.0
    %891 = vmatpush2.msra.mxu0 0.0
    %892 = vmatprep.subr.mxu0 0.0
    %893 = vmatpush2.msra.mxu0 0.0
    %894 = vmatprep.subr.mxu0 0.0
    %895 = vmatpush2.msra.mxu0 0.0
    %896 = vmatprep.subr.mxu0 0.0
    %897 = vmatpush2.msra.mxu0 0.0
    %898 = vmatprep.subr.mxu0 0.0
    %899 = vmatpush2.msra.mxu0 0.0
    %900 = vmatprep.subr.mxu0 0.0
    %901 = vmatpush2.msra.mxu0 0.0
    %902 = vmatprep.subr.mxu0 0.0
    %903 = vmatpush2.msra.mxu0 0.0
    %904 = vmatprep.subr.mxu0 0.0
    %905 = vmatpush2.msra.mxu0 0.0
    %906 = vmatprep.subr.mxu0 0.0
    %907 = vmatpush2.msra.mxu0 0.0
    %908 = vmatprep.subr.mxu0 0.0
    %909 = vmatpush2.msra.mxu0 0.0
    %910 = vmatprep.mubr.f32.mxu0 0.0
    %911 = vmatmul.mubr.f32.gmra.mxu0 %v751
    %v912 = vpop.f32.mrf.mxu0
    %v913 = vadd.f32 %v747, %v912
    %v914 = vpop.f32.mrf.mxu0
    %915 = vmatprep.mubr.f32.mxu0 0.0
    %916 = vmatmul.mubr.f32.gmra.mxu0 %v754
    %v917 = vpop.f32.mrf.mxu0
    %v918 = vadd.f32 %v747, %v917
    %v919 = vpop.f32.mrf.mxu0
    %920 = vmatprep.mubr.f32.mxu0 0.0
    %921 = vmatmul.mubr.f32.gmra.mxu0 %v757
    %v922 = vpop.f32.mrf.mxu0
    %v923 = vadd.f32 %v747, %v922
    %v924 = vpop.f32.mrf.mxu0
    %925 = vmatprep.mubr.f32.mxu0 0.0
    %926 = vmatmul.mubr.f32.gmra.mxu0 %v760
    %v927 = vpop.f32.mrf.mxu0
    %v928 = vadd.f32 %v747, %v927
    %v929 = vpop.f32.mrf.mxu0
    %930 = vmatprep.mubr.f32.mxu0 0.0
    %931 = vmatmul.mubr.f32.gmra.mxu0 %v763
    %v932 = vpop.f32.mrf.mxu0
    %v933 = vadd.f32 %v747, %v932
    %v934 = vpop.f32.mrf.mxu0
    %935 = vmatprep.mubr.f32.mxu0 0.0
    %936 = vmatmul.mubr.f32.gmra.mxu0 %v766
    %v937 = vpop.f32.mrf.mxu0
    %v938 = vadd.f32 %v747, %v937
    %v939 = vpop.f32.mrf.mxu0
    %940 = vmatprep.mubr.f32.mxu0 0.0
    %941 = vmatmul.mubr.f32.gmra.mxu0 %v769
    %v942 = vpop.f32.mrf.mxu0
    %v943 = vadd.f32 %v747, %v942
    %v944 = vpop.f32.mrf.mxu0
    %945 = vmatprep.mubr.f32.mxu0 0.0
    %946 = vmatmul.mubr.f32.gmra.mxu0 %v772
    %v947 = vpop.f32.mrf.mxu0
    %v948 = vadd.f32 %v747, %v947
    %v949 = vpop.f32.mrf.mxu0
    %950 = vmatprep.mubr.f32.mxu0 0.0
    %951 = vmatmul.mubr.f32.gmra.mxu0 %v775
    %v952 = vpop.f32.mrf.mxu0
    %v953 = vadd.f32 %v747, %v952
    %v954 = vpop.f32.mrf.mxu0
    %955 = vmatprep.mubr.f32.mxu0 0.0
    %956 = vmatmul.mubr.f32.gmra.mxu0 %v778
    %v957 = vpop.f32.mrf.mxu0
    %v958 = vadd.f32 %v747, %v957
    %v959 = vpop.f32.mrf.mxu0
    %960 = vmatprep.mubr.f32.mxu0 0.0
    %961 = vmatmul.mubr.f32.gmra.mxu0 %v781
    %v962 = vpop.f32.mrf.mxu0
    %v963 = vadd.f32 %v747, %v962
    %v964 = vpop.f32.mrf.mxu0
    %965 = vmatprep.mubr.f32.mxu0 0.0
    %966 = vmatmul.mubr.f32.gmra.mxu0 %v784
    %v967 = vpop.f32.mrf.mxu0
    %v968 = vadd.f32 %v747, %v967
    %v969 = vpop.f32.mrf.mxu0
    %970 = vmatprep.mubr.f32.mxu0 0.0
    %971 = vmatmul.mubr.f32.gmra.mxu0 %v787
    %v972 = vpop.f32.mrf.mxu0
    %v973 = vadd.f32 %v747, %v972
    %v974 = vpop.f32.mrf.mxu0
    %975 = vmatprep.mubr.f32.mxu0 0.0
    %976 = vmatmul.mubr.f32.gmra.mxu0 %v790
    %v977 = vpop.f32.mrf.mxu0
    %v978 = vadd.f32 %v747, %v977
    %v979 = vpop.f32.mrf.mxu0
    %980 = vmatprep.mubr.f32.mxu0 0.0
    %981 = vmatmul.mubr.f32.gmra.mxu0 %v793
    %v982 = vpop.f32.mrf.mxu0
    %v983 = vadd.f32 %v747, %v982
    %v984 = vpop.f32.mrf.mxu0
    %985 = vmatprep.mubr.f32.mxu0 0.0
    %986 = vmatmul.mubr.f32.gmra.mxu0 %v796
    %v987 = vpop.f32.mrf.mxu0
    %v988 = vadd.f32 %v747, %v987
    %v989 = vpop.f32.mrf.mxu0
    %990 = vmatprep.mubr.f32.mxu0 0.0
    %991 = vmatmul.mubr.f32.gmra.mxu0 %v799
    %v992 = vpop.f32.mrf.mxu0
    %v993 = vadd.f32 %v747, %v992
    %v994 = vpop.f32.mrf.mxu0
    %995 = vmatprep.mubr.f32.mxu0 0.0
    %996 = vmatmul.mubr.f32.gmra.mxu0 %v802
    %v997 = vpop.f32.mrf.mxu0
    %v998 = vadd.f32 %v747, %v997
    %v999 = vpop.f32.mrf.mxu0
    %1000 = vmatprep.mubr.f32.mxu0 0.0
    %1001 = vmatmul.mubr.f32.gmra.mxu0 %v805
    %v1002 = vpop.f32.mrf.mxu0
    %v1003 = vadd.f32 %v747, %v1002
    %v1004 = vpop.f32.mrf.mxu0
    %1005 = vmatprep.mubr.f32.mxu0 0.0
    %1006 = vmatmul.mubr.f32.gmra.mxu0 %v808
    %v1007 = vpop.f32.mrf.mxu0
    %v1008 = vadd.f32 %v747, %v1007
    %v1009 = vpop.f32.mrf.mxu0
    %1010 = vmatprep.mubr.f32.mxu0 0.0
    %1011 = vmatmul.mubr.f32.gmra.mxu0 %v811
    %v1012 = vpop.f32.mrf.mxu0
    %v1013 = vadd.f32 %v747, %v1012
    %v1014 = vpop.f32.mrf.mxu0
    %1015 = vmatprep.mubr.f32.mxu0 0.0
    %1016 = vmatmul.mubr.f32.gmra.mxu0 %v814
    %v1017 = vpop.f32.mrf.mxu0
    %v1018 = vadd.f32 %v747, %v1017
    %v1019 = vpop.f32.mrf.mxu0
    %1020 = vmatprep.mubr.f32.mxu0 0.0
    %1021 = vmatmul.mubr.f32.gmra.mxu0 %v817
    %v1022 = vpop.f32.mrf.mxu0
    %v1023 = vadd.f32 %v747, %v1022
    %v1024 = vpop.f32.mrf.mxu0
    %1025 = vmatprep.mubr.f32.mxu0 0.0
    %1026 = vmatmul.mubr.f32.gmra.mxu0 %v820
    %v1027 = vpop.f32.mrf.mxu0
    %v1028 = vadd.f32 %v747, %v1027
    %v1029 = vpop.f32.mrf.mxu0
    %1030 = vmatprep.mubr.f32.mxu0 0.0
    %1031 = vmatmul.mubr.f32.gmra.mxu0 %v823
    %v1032 = vpop.f32.mrf.mxu0
    %v1033 = vadd.f32 %v747, %v1032
    %v1034 = vpop.f32.mrf.mxu0
    %1035 = vmatprep.mubr.f32.mxu0 0.0
    %1036 = vmatmul.mubr.f32.gmra.mxu0 %v826
    %v1037 = vpop.f32.mrf.mxu0
    %v1038 = vadd.f32 %v747, %v1037
    %v1039 = vpop.f32.mrf.mxu0
    %1040 = vmatprep.mubr.f32.mxu0 0.0
    %1041 = vmatmul.mubr.f32.gmra.mxu0 %v829
    %v1042 = vpop.f32.mrf.mxu0
    %v1043 = vadd.f32 %v747, %v1042
    %v1044 = vpop.f32.mrf.mxu0
    %1045 = vmatprep.mubr.f32.mxu0 0.0
    %1046 = vmatmul.mubr.f32.gmra.mxu0 %v832
    %v1047 = vpop.f32.mrf.mxu0
    %v1048 = vadd.f32 %v747, %v1047
    %v1049 = vpop.f32.mrf.mxu0
    %1050 = vmatprep.mubr.f32.mxu0 0.0
    %1051 = vmatmul.mubr.f32.gmra.mxu0 %v835
    %v1052 = vpop.f32.mrf.mxu0
    %v1053 = vadd.f32 %v747, %v1052
    %v1054 = vpop.f32.mrf.mxu0
    %1055 = vmatprep.mubr.f32.mxu0 0.0
    %1056 = vmatmul.mubr.f32.gmra.mxu0 %v838
    %v1057 = vpop.f32.mrf.mxu0
    %v1058 = vadd.f32 %v747, %v1057
    %v1059 = vpop.f32.mrf.mxu0
    %1060 = vmatprep.mubr.f32.mxu0 0.0
    %1061 = vmatmul.mubr.f32.gmra.mxu0 %v841
    %v1062 = vpop.f32.mrf.mxu0
    %v1063 = vadd.f32 %v747, %v1062
    %v1064 = vpop.f32.mrf.mxu0
    %1065 = vmatprep.mubr.f32.mxu0 0.0
    %1066 = vmatmul.mubr.f32.gmra.mxu0 %v844
    %v1067 = vpop.f32.mrf.mxu0
    %v1068 = vadd.f32 %v747, %v1067
    %v1069 = vpop.f32.mrf.mxu0
    %1070 = vdwg.mxu0
    %v1071 = vmax.f32 %v913, 0.0
    %v1072 = vmax.f32 %v918, 0.0
    %v1073 = vmax.f32 %v923, 0.0
    %v1074 = vmax.f32 %v928, 0.0
    %v1075 = vmax.f32 %v933, 0.0
    %v1076 = vmax.f32 %v938, 0.0
    %v1077 = vmax.f32 %v943, 0.0
    %v1078 = vmax.f32 %v948, 0.0
    %v1079 = vmax.f32 %v953, 0.0
    %v1080 = vmax.f32 %v958, 0.0
    %v1081 = vmax.f32 %v963, 0.0
    %v1082 = vmax.f32 %v968, 0.0
    %v1083 = vmax.f32 %v973, 0.0
    %v1084 = vmax.f32 %v978, 0.0
    %v1085 = vmax.f32 %v983, 0.0
    %v1086 = vmax.f32 %v988, 0.0
    %v1087 = vmax.f32 %v993, 0.0
    %v1088 = vmax.f32 %v998, 0.0
    %v1089 = vmax.f32 %v1003, 0.0
    %v1090 = vmax.f32 %v1008, 0.0
    %v1091 = vmax.f32 %v1013, 0.0
    %v1092 = vmax.f32 %v1018, 0.0
    %v1093 = vmax.f32 %v1023, 0.0
    %v1094 = vmax.f32 %v1028, 0.0
    %v1095 = vmax.f32 %v1033, 0.0
    %v1096 = vmax.f32 %v1038, 0.0
    %v1097 = vmax.f32 %v1043, 0.0
    %v1098 = vmax.f32 %v1048, 0.0
    %v1099 = vmax.f32 %v1053, 0.0
    %v1100 = vmax.f32 %v1058, 0.0
    %v1101 = vmax.f32 %v1063, 0.0
    %v1102 = vmax.f32 %v1068, 0.0
    %v1103 = vld [vmem:[%s6] sm:$0xff]
    %v1104 = vld [vmem:[%s6 + $0x8] sm:$0xff]
    %v1105 = vld [vmem:[%s7] sm:$0x1]
    %v1107 = vlaneseq
    %v1108 = vshrl.u32 %v1107, 7
    %v1109 = vsub.s32 0, %v1108
    %v1110 = vrot.slane %v1105, %v1109
    %v1113 = vsel %vm749, %v1071, 0
    %v1116 = vsel %vm749, %v1072, 0
    %v1119 = vsel %vm749, %v1073, 0
    %v1122 = vsel %vm749, %v1074, 0
    %v1125 = vsel %vm749, %v1075, 0
    %v1128 = vsel %vm749, %v1076, 0
    %v1131 = vsel %vm749, %v1077, 0
    %v1134 = vsel %vm749, %v1078, 0
    %v1137 = vsel %vm749, %v1079, 0
    %v1140 = vsel %vm749, %v1080, 0
    %v1143 = vsel %vm749, %v1081, 0
    %v1146 = vsel %vm749, %v1082, 0
    %v1149 = vsel %vm749, %v1083, 0
    %v1152 = vsel %vm749, %v1084, 0
    %v1155 = vsel %vm749, %v1085, 0
    %v1158 = vsel %vm749, %v1086, 0
    %v1161 = vsel %vm749, %v1087, 0
    %v1164 = vsel %vm749, %v1088, 0
    %v1167 = vsel %vm749, %v1089, 0
    %v1170 = vsel %vm749, %v1090, 0
    %v1173 = vsel %vm749, %v1091, 0
    %v1176 = vsel %vm749, %v1092, 0
    %v1179 = vsel %vm749, %v1093, 0
    %v1182 = vsel %vm749, %v1094, 0
    %v1185 = vsel %vm749, %v1095, 0
    %v1188 = vsel %vm749, %v1096, 0
    %v1191 = vsel %vm749, %v1097, 0
    %v1194 = vsel %vm749, %v1098, 0
    %v1197 = vsel %vm749, %v1099, 0
    %v1200 = vsel %vm749, %v1100, 0
    %v1203 = vsel %vm749, %v1101, 0
    %v1206 = vsel %vm749, %v1102, 0
    %1208 = vmatprep.subr.mxu0 0.0
    %1209 = vmatpush1.msra.mxu0 0.0
    %1210 = vmatprep.subr.mxu0 0.0
    %1211 = vmatpush1.msra.mxu0 0.0
    %1212 = vmatprep.subr.mxu0 0.0
    %1213 = vmatpush1.msra.mxu0 0.0
    %1214 = vmatprep.subr.mxu0 0.0
    %1215 = vmatpush1.msra.mxu0 0.0
    %1216 = vmatprep.subr.mxu0 0.0
    %1217 = vmatpush1.msra.mxu0 0.0
    %1218 = vmatprep.subr.mxu0 0.0
    %1219 = vmatpush1.msra.mxu0 0.0
    %1220 = vmatprep.subr.mxu0 0.0
    %1221 = vmatpush1.msra.mxu0 0.0
    %1222 = vmatprep.subr.mxu0 0.0
    %1223 = vmatpush1.msra.mxu0 0.0
    %1224 = vmatprep.subr.mxu0 0.0
    %1225 = vmatpush1.msra.mxu0 0.0
    %1226 = vmatprep.subr.mxu0 0.0
    %1227 = vmatpush1.msra.mxu0 0.0
    %1228 = vmatprep.subr.mxu0 0.0
    %1229 = vmatpush1.msra.mxu0 0.0
    %1230 = vmatprep.subr.mxu0 0.0
    %1231 = vmatpush1.msra.mxu0 0.0
    %1232 = vmatprep.subr.mxu0 0.0
    %1233 = vmatpush1.msra.mxu0 0.0
    %1234 = vmatprep.subr.mxu0 0.0
    %1235 = vmatpush1.msra.mxu0 0.0
    %1236 = vmatprep.subr.mxu0 0.0
    %1237 = vmatpush1.msra.mxu0 %v1104
    %1238 = vmatprep.subr.mxu0 0.0
    %1239 = vmatpush1.msra.mxu0 %v1103
    %1240 = vmatprep.subr.mxu0 0.0
    %1241 = vmatpush2.msra.mxu0 0.0
    %1242 = vmatprep.subr.mxu0 0.0
    %1243 = vmatpush2.msra.mxu0 0.0
    %1244 = vmatprep.subr.mxu0 0.0
    %1245 = vmatpush2.msra.mxu0 0.0
    %1246 = vmatprep.subr.mxu0 0.0
    %1247 = vmatpush2.msra.mxu0 0.0
    %1248 = vmatprep.subr.mxu0 0.0
    %1249 = vmatpush2.msra.mxu0 0.0
    %1250 = vmatprep.subr.mxu0 0.0
    %1251 = vmatpush2.msra.mxu0 0.0
    %1252 = vmatprep.subr.mxu0 0.0
    %1253 = vmatpush2.msra.mxu0 0.0
    %1254 = vmatprep.subr.mxu0 0.0
    %1255 = vmatpush2.msra.mxu0 0.0
    %1256 = vmatprep.subr.mxu0 0.0
    %1257 = vmatpush2.msra.mxu0 0.0
    %1258 = vmatprep.subr.mxu0 0.0
    %1259 = vmatpush2.msra.mxu0 0.0
    %1260 = vmatprep.subr.mxu0 0.0
    %1261 = vmatpush2.msra.mxu0 0.0
    %1262 = vmatprep.subr.mxu0 0.0
    %1263 = vmatpush2.msra.mxu0 0.0
    %1264 = vmatprep.subr.mxu0 0.0
    %1265 = vmatpush2.msra.mxu0 0.0
    %1266 = vmatprep.subr.mxu0 0.0
    %1267 = vmatpush2.msra.mxu0 0.0
    %1268 = vmatprep.subr.mxu0 0.0
    %1269 = vmatpush2.msra.mxu0 0.0
    %1270 = vmatprep.subr.mxu0 0.0
    %1271 = vmatpush2.msra.mxu0 0.0
    %1272 = vmatprep.mubr.f32.mxu0 0.0
    %1273 = vmatmul.mubr.f32.gmra.mxu0 %v1113
    %v1274 = vpop.f32.mrf.mxu0
    %v1275 = vadd.f32 %v1110, %v1274
    %v1276 = vpop.f32.mrf.mxu0
    %1277 = vmatprep.mubr.f32.mxu0 0.0
    %1278 = vmatmul.mubr.f32.gmra.mxu0 %v1116
    %v1279 = vpop.f32.mrf.mxu0
    %v1280 = vadd.f32 %v1110, %v1279
    %v1281 = vpop.f32.mrf.mxu0
    %1282 = vmatprep.mubr.f32.mxu0 0.0
    %1283 = vmatmul.mubr.f32.gmra.mxu0 %v1119
    %v1284 = vpop.f32.mrf.mxu0
    %v1285 = vadd.f32 %v1110, %v1284
    %v1286 = vpop.f32.mrf.mxu0
    %1287 = vmatprep.mubr.f32.mxu0 0.0
    %1288 = vmatmul.mubr.f32.gmra.mxu0 %v1122
    %v1289 = vpop.f32.mrf.mxu0
    %v1290 = vadd.f32 %v1110, %v1289
    %v1291 = vpop.f32.mrf.mxu0
    %1292 = vmatprep.mubr.f32.mxu0 0.0
    %1293 = vmatmul.mubr.f32.gmra.mxu0 %v1125
    %v1294 = vpop.f32.mrf.mxu0
    %v1295 = vadd.f32 %v1110, %v1294
    %v1296 = vpop.f32.mrf.mxu0
    %1297 = vmatprep.mubr.f32.mxu0 0.0
    %1298 = vmatmul.mubr.f32.gmra.mxu0 %v1128
    %v1299 = vpop.f32.mrf.mxu0
    %v1300 = vadd.f32 %v1110, %v1299
    %v1301 = vpop.f32.mrf.mxu0
    %1302 = vmatprep.mubr.f32.mxu0 0.0
    %1303 = vmatmul.mubr.f32.gmra.mxu0 %v1131
    %v1304 = vpop.f32.mrf.mxu0
    %v1305 = vadd.f32 %v1110, %v1304
    %v1306 = vpop.f32.mrf.mxu0
    %1307 = vmatprep.mubr.f32.mxu0 0.0
    %1308 = vmatmul.mubr.f32.gmra.mxu0 %v1134
    %v1309 = vpop.f32.mrf.mxu0
    %v1310 = vadd.f32 %v1110, %v1309
    %v1311 = vpop.f32.mrf.mxu0
    %1312 = vmatprep.mubr.f32.mxu0 0.0
    %1313 = vmatmul.mubr.f32.gmra.mxu0 %v1137
    %v1314 = vpop.f32.mrf.mxu0
    %v1315 = vadd.f32 %v1110, %v1314
    %v1316 = vpop.f32.mrf.mxu0
    %1317 = vmatprep.mubr.f32.mxu0 0.0
    %1318 = vmatmul.mubr.f32.gmra.mxu0 %v1140
    %v1319 = vpop.f32.mrf.mxu0
    %v1320 = vadd.f32 %v1110, %v1319
    %v1321 = vpop.f32.mrf.mxu0
    %1322 = vmatprep.mubr.f32.mxu0 0.0
    %1323 = vmatmul.mubr.f32.gmra.mxu0 %v1143
    %v1324 = vpop.f32.mrf.mxu0
    %v1325 = vadd.f32 %v1110, %v1324
    %v1326 = vpop.f32.mrf.mxu0
    %1327 = vmatprep.mubr.f32.mxu0 0.0
    %1328 = vmatmul.mubr.f32.gmra.mxu0 %v1146
    %v1329 = vpop.f32.mrf.mxu0
    %v1330 = vadd.f32 %v1110, %v1329
    %v1331 = vpop.f32.mrf.mxu0
    %1332 = vmatprep.mubr.f32.mxu0 0.0
    %1333 = vmatmul.mubr.f32.gmra.mxu0 %v1149
    %v1334 = vpop.f32.mrf.mxu0
    %v1335 = vadd.f32 %v1110, %v1334
    %v1336 = vpop.f32.mrf.mxu0
    %1337 = vmatprep.mubr.f32.mxu0 0.0
    %1338 = vmatmul.mubr.f32.gmra.mxu0 %v1152
    %v1339 = vpop.f32.mrf.mxu0
    %v1340 = vadd.f32 %v1110, %v1339
    %v1341 = vpop.f32.mrf.mxu0
    %1342 = vmatprep.mubr.f32.mxu0 0.0
    %1343 = vmatmul.mubr.f32.gmra.mxu0 %v1155
    %v1344 = vpop.f32.mrf.mxu0
    %v1345 = vadd.f32 %v1110, %v1344
    %v1346 = vpop.f32.mrf.mxu0
    %1347 = vmatprep.mubr.f32.mxu0 0.0
    %1348 = vmatmul.mubr.f32.gmra.mxu0 %v1158
    %v1349 = vpop.f32.mrf.mxu0
    %v1350 = vadd.f32 %v1110, %v1349
    %v1351 = vpop.f32.mrf.mxu0
    %1352 = vmatprep.mubr.f32.mxu0 0.0
    %1353 = vmatmul.mubr.f32.gmra.mxu0 %v1161
    %v1354 = vpop.f32.mrf.mxu0
    %v1355 = vadd.f32 %v1110, %v1354
    %v1356 = vpop.f32.mrf.mxu0
    %1357 = vmatprep.mubr.f32.mxu0 0.0
    %1358 = vmatmul.mubr.f32.gmra.mxu0 %v1164
    %v1359 = vpop.f32.mrf.mxu0
    %v1360 = vadd.f32 %v1110, %v1359
    %v1361 = vpop.f32.mrf.mxu0
    %1362 = vmatprep.mubr.f32.mxu0 0.0
    %1363 = vmatmul.mubr.f32.gmra.mxu0 %v1167
    %v1364 = vpop.f32.mrf.mxu0
    %v1365 = vadd.f32 %v1110, %v1364
    %v1366 = vpop.f32.mrf.mxu0
    %1367 = vmatprep.mubr.f32.mxu0 0.0
    %1368 = vmatmul.mubr.f32.gmra.mxu0 %v1170
    %v1369 = vpop.f32.mrf.mxu0
    %v1370 = vadd.f32 %v1110, %v1369
    %v1371 = vpop.f32.mrf.mxu0
    %1372 = vmatprep.mubr.f32.mxu0 0.0
    %1373 = vmatmul.mubr.f32.gmra.mxu0 %v1173
    %v1374 = vpop.f32.mrf.mxu0
    %v1375 = vadd.f32 %v1110, %v1374
    %v1376 = vpop.f32.mrf.mxu0
    %1377 = vmatprep.mubr.f32.mxu0 0.0
    %1378 = vmatmul.mubr.f32.gmra.mxu0 %v1176
    %v1379 = vpop.f32.mrf.mxu0
    %v1380 = vadd.f32 %v1110, %v1379
    %v1381 = vpop.f32.mrf.mxu0
    %1382 = vmatprep.mubr.f32.mxu0 0.0
    %1383 = vmatmul.mubr.f32.gmra.mxu0 %v1179
    %v1384 = vpop.f32.mrf.mxu0
    %v1385 = vadd.f32 %v1110, %v1384
    %v1386 = vpop.f32.mrf.mxu0
    %1387 = vmatprep.mubr.f32.mxu0 0.0
    %1388 = vmatmul.mubr.f32.gmra.mxu0 %v1182
    %v1389 = vpop.f32.mrf.mxu0
    %v1390 = vadd.f32 %v1110, %v1389
    %v1391 = vpop.f32.mrf.mxu0
    %1392 = vmatprep.mubr.f32.mxu0 0.0
    %1393 = vmatmul.mubr.f32.gmra.mxu0 %v1185
    %v1394 = vpop.f32.mrf.mxu0
    %v1395 = vadd.f32 %v1110, %v1394
    %v1396 = vpop.f32.mrf.mxu0
    %1397 = vmatprep.mubr.f32.mxu0 0.0
    %1398 = vmatmul.mubr.f32.gmra.mxu0 %v1188
    %v1399 = vpop.f32.mrf.mxu0
    %v1400 = vadd.f32 %v1110, %v1399
    %v1401 = vpop.f32.mrf.mxu0
    %1402 = vmatprep.mubr.f32.mxu0 0.0
    %1403 = vmatmul.mubr.f32.gmra.mxu0 %v1191
    %v1404 = vpop.f32.mrf.mxu0
    %v1405 = vadd.f32 %v1110, %v1404
    %v1406 = vpop.f32.mrf.mxu0
    %1407 = vmatprep.mubr.f32.mxu0 0.0
    %1408 = vmatmul.mubr.f32.gmra.mxu0 %v1194
    %v1409 = vpop.f32.mrf.mxu0
    %v1410 = vadd.f32 %v1110, %v1409
    %v1411 = vpop.f32.mrf.mxu0
    %1412 = vmatprep.mubr.f32.mxu0 0.0
    %1413 = vmatmul.mubr.f32.gmra.mxu0 %v1197
    %v1414 = vpop.f32.mrf.mxu0
    %v1415 = vadd.f32 %v1110, %v1414
    %v1416 = vpop.f32.mrf.mxu0
    %1417 = vmatprep.mubr.f32.mxu0 0.0
    %1418 = vmatmul.mubr.f32.gmra.mxu0 %v1200
    %v1419 = vpop.f32.mrf.mxu0
    %v1420 = vadd.f32 %v1110, %v1419
    %v1421 = vpop.f32.mrf.mxu0
    %1422 = vmatprep.mubr.f32.mxu0 0.0
    %1423 = vmatmul.mubr.f32.gmra.mxu0 %v1203
    %v1424 = vpop.f32.mrf.mxu0
    %v1425 = vadd.f32 %v1110, %v1424
    %v1426 = vpop.f32.mrf.mxu0
    %1427 = vmatprep.mubr.f32.mxu0 0.0
    %1428 = vmatmul.mubr.f32.gmra.mxu0 %v1206
    %v1429 = vpop.f32.mrf.mxu0
    %v1430 = vadd.f32 %v1110, %v1429
    %v1431 = vpop.f32.mrf.mxu0
    %1432 = vdwg.mxu0
    %v1433 = vmax.f32 %v1275, 0.0
    %v1434 = vmax.f32 %v1280, 0.0
    %v1435 = vmax.f32 %v1285, 0.0
    %v1436 = vmax.f32 %v1290, 0.0
    %v1437 = vmax.f32 %v1295, 0.0
    %v1438 = vmax.f32 %v1300, 0.0
    %v1439 = vmax.f32 %v1305, 0.0
    %v1440 = vmax.f32 %v1310, 0.0
    %v1441 = vmax.f32 %v1315, 0.0
    %v1442 = vmax.f32 %v1320, 0.0
    %v1443 = vmax.f32 %v1325, 0.0
    %v1444 = vmax.f32 %v1330, 0.0
    %v1445 = vmax.f32 %v1335, 0.0
    %v1446 = vmax.f32 %v1340, 0.0
    %v1447 = vmax.f32 %v1345, 0.0
    %v1448 = vmax.f32 %v1350, 0.0
    %v1449 = vmax.f32 %v1355, 0.0
    %v1450 = vmax.f32 %v1360, 0.0
    %v1451 = vmax.f32 %v1365, 0.0
    %v1452 = vmax.f32 %v1370, 0.0
    %v1453 = vmax.f32 %v1375, 0.0
    %v1454 = vmax.f32 %v1380, 0.0
    %v1455 = vmax.f32 %v1385, 0.0
    %v1456 = vmax.f32 %v1390, 0.0
    %v1457 = vmax.f32 %v1395, 0.0
    %v1458 = vmax.f32 %v1400, 0.0
    %v1459 = vmax.f32 %v1405, 0.0
    %v1460 = vmax.f32 %v1410, 0.0
    %v1461 = vmax.f32 %v1415, 0.0
    %v1462 = vmax.f32 %v1420, 0.0
    %v1463 = vmax.f32 %v1425, 0.0
    %v1464 = vmax.f32 %v1430, 0.0
    %v1465 = vmax.f32 %v1433, %v1437
    %v1466 = vmax.f32 %v1434, %v1438
    %v1467 = vmax.f32 %v1435, %v1439
    %v1468 = vmax.f32 %v1436, %v1440
    %v1469 = vmax.f32 %v1465, %v1441
    %v1470 = vmax.f32 %v1466, %v1442
    %v1471 = vmax.f32 %v1467, %v1443
    %v1472 = vmax.f32 %v1468, %v1444
    %v1473 = vmax.f32 %v1469, %v1445
    %v1474 = vmax.f32 %v1470, %v1446
    %v1475 = vmax.f32 %v1471, %v1447
    %v1476 = vmax.f32 %v1472, %v1448
    %v1477 = vmax.f32 %v1473, %v1449
    %v1478 = vmax.f32 %v1474, %v1450
    %v1479 = vmax.f32 %v1475, %v1451
    %v1480 = vmax.f32 %v1476, %v1452
    %v1481 = vmax.f32 %v1477, %v1453
    %v1482 = vmax.f32 %v1478, %v1454
    %v1483 = vmax.f32 %v1479, %v1455
    %v1484 = vmax.f32 %v1480, %v1456
    %v1485 = vmax.f32 %v1481, %v1457
    %v1486 = vmax.f32 %v1482, %v1458
    %v1487 = vmax.f32 %v1483, %v1459
    %v1488 = vmax.f32 %v1484, %v1460
    %v1489 = vmax.f32 %v1485, %v1461
    %v1490 = vmax.f32 %v1486, %v1462
    %v1491 = vmax.f32 %v1487, %v1463
    %v1492 = vmax.f32 %v1488, %v1464
    %v1493 = vld [vmem:[%s1] sm:$0xff]
    %v1494 = vld [vmem:[%s1 + $0x8] sm:$0xff]
    %v1495 = vld [vmem:[%s1 + $0x10] sm:$0xff]
    %v1496 = vld [vmem:[%s1 + $0x18] sm:$0xff]
    %v1497 = vld [vmem:[%s1 + $0x20] sm:$0xff]
    %v1498 = vld [vmem:[%s1 + $0x28] sm:$0xff]
    %v1499 = vld [vmem:[%s1 + $0x30] sm:$0xff]
    %v1500 = vld [vmem:[%s1 + $0x38] sm:$0xff]
    %v1501 = vld [vmem:[%s1 + $0x40] sm:$0xff]
    %v1502 = vld [vmem:[%s1 + $0x48] sm:$0xff]
    %v1503 = vld [vmem:[%s1 + $0x50] sm:$0xff]
    %v1504 = vld [vmem:[%s1 + $0x58] sm:$0xff]
    %v1505 = vld [vmem:[%s1 + $0x60] sm:$0xff]
    %v1506 = vld [vmem:[%s1 + $0x68] sm:$0xff]
    %v1507 = vld [vmem:[%s1 + $0x70] sm:$0xff]
    %v1508 = vld [vmem:[%s1 + $0x78] sm:$0xff]
    %v1509 = vld [vmem:[%s1 + $0x80] sm:$0xff]
    %v1510 = vld [vmem:[%s1 + $0x88] sm:$0xff]
    %v1511 = vld [vmem:[%s1 + $0x90] sm:$0xff]
    %v1512 = vld [vmem:[%s1 + $0x98] sm:$0xff]
    %v1513 = vld [vmem:[%s1 + $0xa0] sm:$0xff]
    %v1514 = vld [vmem:[%s1 + $0xa8] sm:$0xff]
    %v1515 = vld [vmem:[%s1 + $0xb0] sm:$0xff]
    %v1516 = vld [vmem:[%s1 + $0xb8] sm:$0xff]
    %v1517 = vld [vmem:[%s1 + $0xc0] sm:$0xff]
    %v1518 = vld [vmem:[%s1 + $0xc8] sm:$0xff]
    %v1519 = vld [vmem:[%s1 + $0xd0] sm:$0xff]
    %v1520 = vld [vmem:[%s1 + $0xd8] sm:$0xff]
    %v1521 = vld [vmem:[%s1 + $0xe0] sm:$0xff]
    %v1522 = vld [vmem:[%s1 + $0xe8] sm:$0xff]
    %v1523 = vld [vmem:[%s1 + $0xf0] sm:$0xff]
    %v1524 = vld [vmem:[%s1 + $0xf8] sm:$0xff]
    %v1525 = vld [vmem:[%s8] sm:$0x7]
    %v1526 = vld [vmem:[%s9] sm:$0x1]
    %1528 = vset.pattern.permute.xlu0 0
    %1529 = vperm.xlu0 %1528, %v1493
    %v1530 = vpop.permute.xlu0 %1529
    %1533 = vset.pattern.permute.xlu0 0
    %1534 = vperm.xlu0 %1533, %v1494
    %v1535 = vpop.permute.xlu0 %1534
    %1538 = vset.pattern.permute.xlu0 0
    %1539 = vperm.xlu0 %1538, %v1495
    %v1540 = vpop.permute.xlu0 %1539
    %1543 = vset.pattern.permute.xlu0 0
    %1544 = vperm.xlu0 %1543, %v1496
    %v1545 = vpop.permute.xlu0 %1544
    %1548 = vset.pattern.permute.xlu0 0
    %1549 = vperm.xlu0 %1548, %v1497
    %v1550 = vpop.permute.xlu0 %1549
    %1553 = vset.pattern.permute.xlu0 0
    %1554 = vperm.xlu0 %1553, %v1498
    %v1555 = vpop.permute.xlu0 %1554
    %1558 = vset.pattern.permute.xlu0 0
    %1559 = vperm.xlu0 %1558, %v1499
    %v1560 = vpop.permute.xlu0 %1559
    %1563 = vset.pattern.permute.xlu0 0
    %1564 = vperm.xlu0 %1563, %v1500
    %v1565 = vpop.permute.xlu0 %1564
    %1568 = vset.pattern.permute.xlu0 0
    %1569 = vperm.xlu0 %1568, %v1501
    %v1570 = vpop.permute.xlu0 %1569
    %1573 = vset.pattern.permute.xlu0 0
    %1574 = vperm.xlu0 %1573, %v1502
    %v1575 = vpop.permute.xlu0 %1574
    %1578 = vset.pattern.permute.xlu0 0
    %1579 = vperm.xlu0 %1578, %v1503
    %v1580 = vpop.permute.xlu0 %1579
    %1583 = vset.pattern.permute.xlu0 0
    %1584 = vperm.xlu0 %1583, %v1504
    %v1585 = vpop.permute.xlu0 %1584
    %1588 = vset.pattern.permute.xlu0 0
    %1589 = vperm.xlu0 %1588, %v1505
    %v1590 = vpop.permute.xlu0 %1589
    %1593 = vset.pattern.permute.xlu0 0
    %1594 = vperm.xlu0 %1593, %v1506
    %v1595 = vpop.permute.xlu0 %1594
    %1598 = vset.pattern.permute.xlu0 0
    %1599 = vperm.xlu0 %1598, %v1507
    %v1600 = vpop.permute.xlu0 %1599
    %1603 = vset.pattern.permute.xlu0 0
    %1604 = vperm.xlu0 %1603, %v1508
    %v1605 = vpop.permute.xlu0 %1604
    %1608 = vset.pattern.permute.xlu0 0
    %1609 = vperm.xlu0 %1608, %v1509
    %v1610 = vpop.permute.xlu0 %1609
    %1613 = vset.pattern.permute.xlu0 0
    %1614 = vperm.xlu0 %1613, %v1510
    %v1615 = vpop.permute.xlu0 %1614
    %1618 = vset.pattern.permute.xlu0 0
    %1619 = vperm.xlu0 %1618, %v1511
    %v1620 = vpop.permute.xlu0 %1619
    %1623 = vset.pattern.permute.xlu0 0
    %1624 = vperm.xlu0 %1623, %v1512
    %v1625 = vpop.permute.xlu0 %1624
    %1628 = vset.pattern.permute.xlu0 0
    %1629 = vperm.xlu0 %1628, %v1513
    %v1630 = vpop.permute.xlu0 %1629
    %1633 = vset.pattern.permute.xlu0 0
    %1634 = vperm.xlu0 %1633, %v1514
    %v1635 = vpop.permute.xlu0 %1634
    %1638 = vset.pattern.permute.xlu0 0
    %1639 = vperm.xlu0 %1638, %v1515
    %v1640 = vpop.permute.xlu0 %1639
    %1643 = vset.pattern.permute.xlu0 0
    %1644 = vperm.xlu0 %1643, %v1516
    %v1645 = vpop.permute.xlu0 %1644
    %1648 = vset.pattern.permute.xlu0 0
    %1649 = vperm.xlu0 %1648, %v1517
    %v1650 = vpop.permute.xlu0 %1649
    %1653 = vset.pattern.permute.xlu0 0
    %1654 = vperm.xlu0 %1653, %v1518
    %v1655 = vpop.permute.xlu0 %1654
    %1658 = vset.pattern.permute.xlu0 0
    %1659 = vperm.xlu0 %1658, %v1519
    %v1660 = vpop.permute.xlu0 %1659
    %1663 = vset.pattern.permute.xlu0 0
    %1664 = vperm.xlu0 %1663, %v1520
    %v1665 = vpop.permute.xlu0 %1664
    %1668 = vset.pattern.permute.xlu0 0
    %1669 = vperm.xlu0 %1668, %v1521
    %v1670 = vpop.permute.xlu0 %1669
    %1673 = vset.pattern.permute.xlu0 0
    %1674 = vperm.xlu0 %1673, %v1522
    %v1675 = vpop.permute.xlu0 %1674
    %1678 = vset.pattern.permute.xlu0 0
    %1679 = vperm.xlu0 %1678, %v1523
    %v1680 = vpop.permute.xlu0 %1679
    %1683 = vset.pattern.permute.xlu0 0
    %1684 = vperm.xlu0 %1683, %v1524
    %v1685 = vpop.permute.xlu0 %1684
    %v1687 = vlaneseq
    %v1688 = vshrl.u32 %v1687, 7
    %v1689 = vsub.s32 0, %v1688
    %v1690 = vrot.slane %v1525, %v1689
    %v1691 = vmul.f32 %v1530, %v1690
    %v1692 = vmul.f32 %v1535, %v1690
    %v1693 = vmul.f32 %v1540, %v1690
    %v1694 = vmul.f32 %v1545, %v1690
    %v1695 = vmul.f32 %v1550, %v1690
    %v1696 = vmul.f32 %v1555, %v1690
    %v1697 = vmul.f32 %v1560, %v1690
    %v1698 = vmul.f32 %v1565, %v1690
    %v1699 = vmul.f32 %v1570, %v1690
    %v1700 = vmul.f32 %v1575, %v1690
    %v1701 = vmul.f32 %v1580, %v1690
    %v1702 = vmul.f32 %v1585, %v1690
    %v1703 = vmul.f32 %v1590, %v1690
    %v1704 = vmul.f32 %v1595, %v1690
    %v1705 = vmul.f32 %v1600, %v1690
    %v1706 = vmul.f32 %v1605, %v1690
    %v1707 = vmul.f32 %v1610, %v1690
    %v1708 = vmul.f32 %v1615, %v1690
    %v1709 = vmul.f32 %v1620, %v1690
    %v1710 = vmul.f32 %v1625, %v1690
    %v1711 = vmul.f32 %v1630, %v1690
    %v1712 = vmul.f32 %v1635, %v1690
    %v1713 = vmul.f32 %v1640, %v1690
    %v1714 = vmul.f32 %v1645, %v1690
    %v1715 = vmul.f32 %v1650, %v1690
    %v1716 = vmul.f32 %v1655, %v1690
    %v1717 = vmul.f32 %v1660, %v1690
    %v1718 = vmul.f32 %v1665, %v1690
    %v1719 = vmul.f32 %v1670, %v1690
    %v1720 = vmul.f32 %v1675, %v1690
    %v1721 = vmul.f32 %v1680, %v1690
    %v1722 = vmul.f32 %v1685, %v1690
    %1723 = vset.pattern.permute.xlu0 1
    %1724 = vperm.xlu0 %1723, %v1493
    %v1725 = vpop.permute.xlu0 %1724
    %1727 = vset.pattern.permute.xlu0 1
    %1728 = vperm.xlu0 %1727, %v1494
    %v1729 = vpop.permute.xlu0 %1728
    %1731 = vset.pattern.permute.xlu0 1
    %1732 = vperm.xlu0 %1731, %v1495
    %v1733 = vpop.permute.xlu0 %1732
    %1735 = vset.pattern.permute.xlu0 1
    %1736 = vperm.xlu0 %1735, %v1496
    %v1737 = vpop.permute.xlu0 %1736
    %1739 = vset.pattern.permute.xlu0 1
    %1740 = vperm.xlu0 %1739, %v1497
    %v1741 = vpop.permute.xlu0 %1740
    %1743 = vset.pattern.permute.xlu0 1
    %1744 = vperm.xlu0 %1743, %v1498
    %v1745 = vpop.permute.xlu0 %1744
    %1747 = vset.pattern.permute.xlu0 1
    %1748 = vperm.xlu0 %1747, %v1499
    %v1749 = vpop.permute.xlu0 %1748
    %1751 = vset.pattern.permute.xlu0 1
    %1752 = vperm.xlu0 %1751, %v1500
    %v1753 = vpop.permute.xlu0 %1752
    %1755 = vset.pattern.permute.xlu0 1
    %1756 = vperm.xlu0 %1755, %v1501
    %v1757 = vpop.permute.xlu0 %1756
    %1759 = vset.pattern.permute.xlu0 1
    %1760 = vperm.xlu0 %1759, %v1502
    %v1761 = vpop.permute.xlu0 %1760
    %1763 = vset.pattern.permute.xlu0 1
    %1764 = vperm.xlu0 %1763, %v1503
    %v1765 = vpop.permute.xlu0 %1764
    %1767 = vset.pattern.permute.xlu0 1
    %1768 = vperm.xlu0 %1767, %v1504
    %v1769 = vpop.permute.xlu0 %1768
    %1771 = vset.pattern.permute.xlu0 1
    %1772 = vperm.xlu0 %1771, %v1505
    %v1773 = vpop.permute.xlu0 %1772
    %1775 = vset.pattern.permute.xlu0 1
    %1776 = vperm.xlu0 %1775, %v1506
    %v1777 = vpop.permute.xlu0 %1776
    %1779 = vset.pattern.permute.xlu0 1
    %1780 = vperm.xlu0 %1779, %v1507
    %v1781 = vpop.permute.xlu0 %1780
    %1783 = vset.pattern.permute.xlu0 1
    %1784 = vperm.xlu0 %1783, %v1508
    %v1785 = vpop.permute.xlu0 %1784
    %1787 = vset.pattern.permute.xlu0 1
    %1788 = vperm.xlu0 %1787, %v1509
    %v1789 = vpop.permute.xlu0 %1788
    %1791 = vset.pattern.permute.xlu0 1
    %1792 = vperm.xlu0 %1791, %v1510
    %v1793 = vpop.permute.xlu0 %1792
    %1795 = vset.pattern.permute.xlu0 1
    %1796 = vperm.xlu0 %1795, %v1511
    %v1797 = vpop.permute.xlu0 %1796
    %1799 = vset.pattern.permute.xlu0 1
    %1800 = vperm.xlu0 %1799, %v1512
    %v1801 = vpop.permute.xlu0 %1800
    %1803 = vset.pattern.permute.xlu0 1
    %1804 = vperm.xlu0 %1803, %v1513
    %v1805 = vpop.permute.xlu0 %1804
    %1807 = vset.pattern.permute.xlu0 1
    %1808 = vperm.xlu0 %1807, %v1514
    %v1809 = vpop.permute.xlu0 %1808
    %1811 = vset.pattern.permute.xlu0 1
    %1812 = vperm.xlu0 %1811, %v1515
    %v1813 = vpop.permute.xlu0 %1812
    %1815 = vset.pattern.permute.xlu0 1
    %1816 = vperm.xlu0 %1815, %v1516
    %v1817 = vpop.permute.xlu0 %1816
    %1819 = vset.pattern.permute.xlu0 1
    %1820 = vperm.xlu0 %1819, %v1517
    %v1821 = vpop.permute.xlu0 %1820
    %1823 = vset.pattern.permute.xlu0 1
    %1824 = vperm.xlu0 %1823, %v1518
    %v1825 = vpop.permute.xlu0 %1824
    %1827 = vset.pattern.permute.xlu0 1
    %1828 = vperm.xlu0 %1827, %v1519
    %v1829 = vpop.permute.xlu0 %1828
    %1831 = vset.pattern.permute.xlu0 1
    %1832 = vperm.xlu0 %1831, %v1520
    %v1833 = vpop.permute.xlu0 %1832
    %1835 = vset.pattern.permute.xlu0 1
    %1836 = vperm.xlu0 %1835, %v1521
    %v1837 = vpop.permute.xlu0 %1836
    %1839 = vset.pattern.permute.xlu0 1
    %1840 = vperm.xlu0 %1839, %v1522
    %v1841 = vpop.permute.xlu0 %1840
    %1843 = vset.pattern.permute.xlu0 1
    %1844 = vperm.xlu0 %1843, %v1523
    %v1845 = vpop.permute.xlu0 %1844
    %1847 = vset.pattern.permute.xlu0 1
    %1848 = vperm.xlu0 %1847, %v1524
    %v1849 = vpop.permute.xlu0 %1848
    %v1851 = vlaneseq
    %v1852 = vshrl.u32 %v1851, 7
    %v1853 = vsub.s32 1, %v1852
    %v1854 = vrot.slane %v1525, %v1853
    %v1855 = vmul.f32 %v1725, %v1854
    %v1856 = vmul.f32 %v1729, %v1854
    %v1857 = vmul.f32 %v1733, %v1854
    %v1858 = vmul.f32 %v1737, %v1854
    %v1859 = vmul.f32 %v1741, %v1854
    %v1860 = vmul.f32 %v1745, %v1854
    %v1861 = vmul.f32 %v1749, %v1854
    %v1862 = vmul.f32 %v1753, %v1854
    %v1863 = vmul.f32 %v1757, %v1854
    %v1864 = vmul.f32 %v1761, %v1854
    %v1865 = vmul.f32 %v1765, %v1854
    %v1866 = vmul.f32 %v1769, %v1854
    %v1867 = vmul.f32 %v1773, %v1854
    %v1868 = vmul.f32 %v1777, %v1854
    %v1869 = vmul.f32 %v1781, %v1854
    %v1870 = vmul.f32 %v1785, %v1854
    %v1871 = vmul.f32 %v1789, %v1854
    %v1872 = vmul.f32 %v1793, %v1854
    %v1873 = vmul.f32 %v1797, %v1854
    %v1874 = vmul.f32 %v1801, %v1854
    %v1875 = vmul.f32 %v1805, %v1854
    %v1876 = vmul.f32 %v1809, %v1854
    %v1877 = vmul.f32 %v1813, %v1854
    %v1878 = vmul.f32 %v1817, %v1854
    %v1879 = vmul.f32 %v1821, %v1854
    %v1880 = vmul.f32 %v1825, %v1854
    %v1881 = vmul.f32 %v1829, %v1854
    %v1882 = vmul.f32 %v1833, %v1854
    %v1883 = vmul.f32 %v1837, %v1854
    %v1884 = vmul.f32 %v1841, %v1854
    %v1885 = vmul.f32 %v1845, %v1854
    %v1886 = vmul.f32 %v1849, %v1854
    %v1887 = vadd.f32 %v1691, %v1855
    %v1888 = vadd.f32 %v1692, %v1856
    %v1889 = vadd.f32 %v1693, %v1857
    %v1890 = vadd.f32 %v1694, %v1858
    %v1891 = vadd.f32 %v1695, %v1859
    %v1892 = vadd.f32 %v1696, %v1860
    %v1893 = vadd.f32 %v1697, %v1861
    %v1894 = vadd.f32 %v1698, %v1862
    %v1895 = vadd.f32 %v1699, %v1863
    %v1896 = vadd.f32 %v1700, %v1864
    %v1897 = vadd.f32 %v1701, %v1865
    %v1898 = vadd.f32 %v1702, %v1866
    %v1899 = vadd.f32 %v1703, %v1867
    %v1900 = vadd.f32 %v1704, %v1868
    %v1901 = vadd.f32 %v1705, %v1869
    %v1902 = vadd.f32 %v1706, %v1870
    %v1903 = vadd.f32 %v1707, %v1871
    %v1904 = vadd.f32 %v1708, %v1872
    %v1905 = vadd.f32 %v1709, %v1873
    %v1906 = vadd.f32 %v1710, %v1874
    %v1907 = vadd.f32 %v1711, %v1875
    %v1908 = vadd.f32 %v1712, %v1876
    %v1909 = vadd.f32 %v1713, %v1877
    %v1910 = vadd.f32 %v1714, %v1878
    %v1911 = vadd.f32 %v1715, %v1879
    %v1912 = vadd.f32 %v1716, %v1880
    %v1913 = vadd.f32 %v1717, %v1881
    %v1914 = vadd.f32 %v1718, %v1882
    %v1915 = vadd.f32 %v1719, %v1883
    %v1916 = vadd.f32 %v1720, %v1884
    %v1917 = vadd.f32 %v1721, %v1885
    %v1918 = vadd.f32 %v1722, %v1886
    %1919 = vset.pattern.permute.xlu0 2
    %1920 = vperm.xlu0 %1919, %v1493
    %v1921 = vpop.permute.xlu0 %1920
    %1923 = vset.pattern.permute.xlu0 2
    %1924 = vperm.xlu0 %1923, %v1494
    %v1925 = vpop.permute.xlu0 %1924
    %1927 = vset.pattern.permute.xlu0 2
    %1928 = vperm.xlu0 %1927, %v1495
    %v1929 = vpop.permute.xlu0 %1928
    %1931 = vset.pattern.permute.xlu0 2
    %1932 = vperm.xlu0 %1931, %v1496
    %v1933 = vpop.permute.xlu0 %1932
    %1935 = vset.pattern.permute.xlu0 2
    %1936 = vperm.xlu0 %1935, %v1497
    %v1937 = vpop.permute.xlu0 %1936
    %1939 = vset.pattern.permute.xlu0 2
    %1940 = vperm.xlu0 %1939, %v1498
    %v1941 = vpop.permute.xlu0 %1940
    %1943 = vset.pattern.permute.xlu0 2
    %1944 = vperm.xlu0 %1943, %v1499
    %v1945 = vpop.permute.xlu0 %1944
    %1947 = vset.pattern.permute.xlu0 2
    %1948 = vperm.xlu0 %1947, %v1500
    %v1949 = vpop.permute.xlu0 %1948
    %1951 = vset.pattern.permute.xlu0 2
    %1952 = vperm.xlu0 %1951, %v1501
    %v1953 = vpop.permute.xlu0 %1952
    %1955 = vset.pattern.permute.xlu0 2
    %1956 = vperm.xlu0 %1955, %v1502
    %v1957 = vpop.permute.xlu0 %1956
    %1959 = vset.pattern.permute.xlu0 2
    %1960 = vperm.xlu0 %1959, %v1503
    %v1961 = vpop.permute.xlu0 %1960
    %1963 = vset.pattern.permute.xlu0 2
    %1964 = vperm.xlu0 %1963, %v1504
    %v1965 = vpop.permute.xlu0 %1964
    %1967 = vset.pattern.permute.xlu0 2
    %1968 = vperm.xlu0 %1967, %v1505
    %v1969 = vpop.permute.xlu0 %1968
    %1971 = vset.pattern.permute.xlu0 2
    %1972 = vperm.xlu0 %1971, %v1506
    %v1973 = vpop.permute.xlu0 %1972
    %1975 = vset.pattern.permute.xlu0 2
    %1976 = vperm.xlu0 %1975, %v1507
    %v1977 = vpop.permute.xlu0 %1976
    %1979 = vset.pattern.permute.xlu0 2
    %1980 = vperm.xlu0 %1979, %v1508
    %v1981 = vpop.permute.xlu0 %1980
    %1983 = vset.pattern.permute.xlu0 2
    %1984 = vperm.xlu0 %1983, %v1509
    %v1985 = vpop.permute.xlu0 %1984
    %1987 = vset.pattern.permute.xlu0 2
    %1988 = vperm.xlu0 %1987, %v1510
    %v1989 = vpop.permute.xlu0 %1988
    %1991 = vset.pattern.permute.xlu0 2
    %1992 = vperm.xlu0 %1991, %v1511
    %v1993 = vpop.permute.xlu0 %1992
    %1995 = vset.pattern.permute.xlu0 2
    %1996 = vperm.xlu0 %1995, %v1512
    %v1997 = vpop.permute.xlu0 %1996
    %1999 = vset.pattern.permute.xlu0 2
    %2000 = vperm.xlu0 %1999, %v1513
    %v2001 = vpop.permute.xlu0 %2000
    %2003 = vset.pattern.permute.xlu0 2
    %2004 = vperm.xlu0 %2003, %v1514
    %v2005 = vpop.permute.xlu0 %2004
    %2007 = vset.pattern.permute.xlu0 2
    %2008 = vperm.xlu0 %2007, %v1515
    %v2009 = vpop.permute.xlu0 %2008
    %2011 = vset.pattern.permute.xlu0 2
    %2012 = vperm.xlu0 %2011, %v1516
    %v2013 = vpop.permute.xlu0 %2012
    %2015 = vset.pattern.permute.xlu0 2
    %2016 = vperm.xlu0 %2015, %v1517
    %v2017 = vpop.permute.xlu0 %2016
    %2019 = vset.pattern.permute.xlu0 2
    %2020 = vperm.xlu0 %2019, %v1518
    %v2021 = vpop.permute.xlu0 %2020
    %2023 = vset.pattern.permute.xlu0 2
    %2024 = vperm.xlu0 %2023, %v1519
    %v2025 = vpop.permute.xlu0 %2024
    %2027 = vset.pattern.permute.xlu0 2
    %2028 = vperm.xlu0 %2027, %v1520
    %v2029 = vpop.permute.xlu0 %2028
    %2031 = vset.pattern.permute.xlu0 2
    %2032 = vperm.xlu0 %2031, %v1521
    %v2033 = vpop.permute.xlu0 %2032
    %2035 = vset.pattern.permute.xlu0 2
    %2036 = vperm.xlu0 %2035, %v1522
    %v2037 = vpop.permute.xlu0 %2036
    %2039 = vset.pattern.permute.xlu0 2
    %2040 = vperm.xlu0 %2039, %v1523
    %v2041 = vpop.permute.xlu0 %2040
    %2043 = vset.pattern.permute.xlu0 2
    %2044 = vperm.xlu0 %2043, %v1524
    %v2045 = vpop.permute.xlu0 %2044
    %v2047 = vlaneseq
    %v2048 = vshrl.u32 %v2047, 7
    %v2049 = vsub.s32 2, %v2048
    %v2050 = vrot.slane %v1525, %v2049
    %v2051 = vmul.f32 %v1921, %v2050
    %v2052 = vmul.f32 %v1925, %v2050
    %v2053 = vmul.f32 %v1929, %v2050
    %v2054 = vmul.f32 %v1933, %v2050
    %v2055 = vmul.f32 %v1937, %v2050
    %v2056 = vmul.f32 %v1941, %v2050
    %v2057 = vmul.f32 %v1945, %v2050
    %v2058 = vmul.f32 %v1949, %v2050
    %v2059 = vmul.f32 %v1953, %v2050
    %v2060 = vmul.f32 %v1957, %v2050
    %v2061 = vmul.f32 %v1961, %v2050
    %v2062 = vmul.f32 %v1965, %v2050
    %v2063 = vmul.f32 %v1969, %v2050
    %v2064 = vmul.f32 %v1973, %v2050
    %v2065 = vmul.f32 %v1977, %v2050
    %v2066 = vmul.f32 %v1981, %v2050
    %v2067 = vmul.f32 %v1985, %v2050
    %v2068 = vmul.f32 %v1989, %v2050
    %v2069 = vmul.f32 %v1993, %v2050
    %v2070 = vmul.f32 %v1997, %v2050
    %v2071 = vmul.f32 %v2001, %v2050
    %v2072 = vmul.f32 %v2005, %v2050
    %v2073 = vmul.f32 %v2009, %v2050
    %v2074 = vmul.f32 %v2013, %v2050
    %v2075 = vmul.f32 %v2017, %v2050
    %v2076 = vmul.f32 %v2021, %v2050
    %v2077 = vmul.f32 %v2025, %v2050
    %v2078 = vmul.f32 %v2029, %v2050
    %v2079 = vmul.f32 %v2033, %v2050
    %v2080 = vmul.f32 %v2037, %v2050
    %v2081 = vmul.f32 %v2041, %v2050
    %v2082 = vmul.f32 %v2045, %v2050
    %v2083 = vadd.f32 %v1887, %v2051
    %v2084 = vadd.f32 %v1888, %v2052
    %v2085 = vadd.f32 %v1889, %v2053
    %v2086 = vadd.f32 %v1890, %v2054
    %v2087 = vadd.f32 %v1891, %v2055
    %v2088 = vadd.f32 %v1892, %v2056
    %v2089 = vadd.f32 %v1893, %v2057
    %v2090 = vadd.f32 %v1894, %v2058
    %v2091 = vadd.f32 %v1895, %v2059
    %v2092 = vadd.f32 %v1896, %v2060
    %v2093 = vadd.f32 %v1897, %v2061
    %v2094 = vadd.f32 %v1898, %v2062
    %v2095 = vadd.f32 %v1899, %v2063
    %v2096 = vadd.f32 %v1900, %v2064
    %v2097 = vadd.f32 %v1901, %v2065
    %v2098 = vadd.f32 %v1902, %v2066
    %v2099 = vadd.f32 %v1903, %v2067
    %v2100 = vadd.f32 %v1904, %v2068
    %v2101 = vadd.f32 %v1905, %v2069
    %v2102 = vadd.f32 %v1906, %v2070
    %v2103 = vadd.f32 %v1907, %v2071
    %v2104 = vadd.f32 %v1908, %v2072
    %v2105 = vadd.f32 %v1909, %v2073
    %v2106 = vadd.f32 %v1910, %v2074
    %v2107 = vadd.f32 %v1911, %v2075
    %v2108 = vadd.f32 %v1912, %v2076
    %v2109 = vadd.f32 %v1913, %v2077
    %v2110 = vadd.f32 %v1914, %v2078
    %v2111 = vadd.f32 %v1915, %v2079
    %v2112 = vadd.f32 %v1916, %v2080
    %v2113 = vadd.f32 %v1917, %v2081
    %v2114 = vadd.f32 %v1918, %v2082
    %v2116 = vlaneseq
    %v2117 = vshrl.u32 %v2116, 7
    %v2118 = vsub.s32 0, %v2117
    %v2119 = vrot.slane %v1526, %v2118
    %v2121 = vadd.f32 %v2083, %v2119
    %v2122 = vadd.f32 %v2084, %v2119
    %v2123 = vadd.f32 %v2085, %v2119
    %v2124 = vadd.f32 %v2086, %v2119
    %v2125 = vadd.f32 %v2087, %v2119
    %v2126 = vadd.f32 %v2088, %v2119
    %v2127 = vadd.f32 %v2089, %v2119
    %v2128 = vadd.f32 %v2090, %v2119
    %v2129 = vadd.f32 %v2091, %v2119
    %v2130 = vadd.f32 %v2092, %v2119
    %v2131 = vadd.f32 %v2093, %v2119
    %v2132 = vadd.f32 %v2094, %v2119
    %v2133 = vadd.f32 %v2095, %v2119
    %v2134 = vadd.f32 %v2096, %v2119
    %v2135 = vadd.f32 %v2097, %v2119
    %v2136 = vadd.f32 %v2098, %v2119
    %v2137 = vadd.f32 %v2099, %v2119
    %v2138 = vadd.f32 %v2100, %v2119
    %v2139 = vadd.f32 %v2101, %v2119
    %v2140 = vadd.f32 %v2102, %v2119
    %v2141 = vadd.f32 %v2103, %v2119
    %v2142 = vadd.f32 %v2104, %v2119
    %v2143 = vadd.f32 %v2105, %v2119
    %v2144 = vadd.f32 %v2106, %v2119
    %v2145 = vadd.f32 %v2107, %v2119
    %v2146 = vadd.f32 %v2108, %v2119
    %v2147 = vadd.f32 %v2109, %v2119
    %v2148 = vadd.f32 %v2110, %v2119
    %v2149 = vadd.f32 %v2111, %v2119
    %v2150 = vadd.f32 %v2112, %v2119
    %v2151 = vadd.f32 %v2113, %v2119
    %v2152 = vadd.f32 %v2114, %v2119
    %v2153 = vmax.f32 %v2121, 0.0
    %v2154 = vmax.f32 %v2122, 0.0
    %v2155 = vmax.f32 %v2123, 0.0
    %v2156 = vmax.f32 %v2124, 0.0
    %v2157 = vmax.f32 %v2125, 0.0
    %v2158 = vmax.f32 %v2126, 0.0
    %v2159 = vmax.f32 %v2127, 0.0
    %v2160 = vmax.f32 %v2128, 0.0
    %v2161 = vmax.f32 %v2129, 0.0
    %v2162 = vmax.f32 %v2130, 0.0
    %v2163 = vmax.f32 %v2131, 0.0
    %v2164 = vmax.f32 %v2132, 0.0
    %v2165 = vmax.f32 %v2133, 0.0
    %v2166 = vmax.f32 %v2134, 0.0
    %v2167 = vmax.f32 %v2135, 0.0
    %v2168 = vmax.f32 %v2136, 0.0
    %v2169 = vmax.f32 %v2137, 0.0
    %v2170 = vmax.f32 %v2138, 0.0
    %v2171 = vmax.f32 %v2139, 0.0
    %v2172 = vmax.f32 %v2140, 0.0
    %v2173 = vmax.f32 %v2141, 0.0
    %v2174 = vmax.f32 %v2142, 0.0
    %v2175 = vmax.f32 %v2143, 0.0
    %v2176 = vmax.f32 %v2144, 0.0
    %v2177 = vmax.f32 %v2145, 0.0
    %v2178 = vmax.f32 %v2146, 0.0
    %v2179 = vmax.f32 %v2147, 0.0
    %v2180 = vmax.f32 %v2148, 0.0
    %v2181 = vmax.f32 %v2149, 0.0
    %v2182 = vmax.f32 %v2150, 0.0
    %v2183 = vmax.f32 %v2151, 0.0
    %v2184 = vmax.f32 %v2152, 0.0
    %v2185 = vld [vmem:[%s10] sm:$0xff]
    %v2186 = vld [vmem:[%s10 + $0x8] sm:$0xff]
    %v2187 = vld [vmem:[%s11] sm:$0x1]
    %v2189 = vlaneseq
    %v2190 = vshrl.u32 %v2189, 7
    %v2191 = vsub.s32 0, %v2190
    %v2192 = vrot.slane %v2187, %v2191
    %v2195 = vsel %vm749, %v2153, 0
    %v2198 = vsel %vm749, %v2154, 0
    %v2201 = vsel %vm749, %v2155, 0
    %v2204 = vsel %vm749, %v2156, 0
    %v2207 = vsel %vm749, %v2157, 0
    %v2210 = vsel %vm749, %v2158, 0
    %v2213 = vsel %vm749, %v2159, 0
    %v2216 = vsel %vm749, %v2160, 0
    %v2219 = vsel %vm749, %v2161, 0
    %v2222 = vsel %vm749, %v2162, 0
    %v2225 = vsel %vm749, %v2163, 0
    %v2228 = vsel %vm749, %v2164, 0
    %v2231 = vsel %vm749, %v2165, 0
    %v2234 = vsel %vm749, %v2166, 0
    %v2237 = vsel %vm749, %v2167, 0
    %v2240 = vsel %vm749, %v2168, 0
    %v2243 = vsel %vm749, %v2169, 0
    %v2246 = vsel %vm749, %v2170, 0
    %v2249 = vsel %vm749, %v2171, 0
    %v2252 = vsel %vm749, %v2172, 0
    %v2255 = vsel %vm749, %v2173, 0
    %v2258 = vsel %vm749, %v2174, 0
    %v2261 = vsel %vm749, %v2175, 0
    %v2264 = vsel %vm749, %v2176, 0
    %v2267 = vsel %vm749, %v2177, 0
    %v2270 = vsel %vm749, %v2178, 0
    %v2273 = vsel %vm749, %v2179, 0
    %v2276 = vsel %vm749, %v2180, 0
    %v2279 = vsel %vm749, %v2181, 0
    %v2282 = vsel %vm749, %v2182, 0
    %v2285 = vsel %vm749, %v2183, 0
    %v2288 = vsel %vm749, %v2184, 0
    %2290 = vmatprep.subr.mxu0 0.0
    %2291 = vmatpush1.msra.mxu0 0.0
    %2292 = vmatprep.subr.mxu0 0.0
    %2293 = vmatpush1.msra.mxu0 0.0
    %2294 = vmatprep.subr.mxu0 0.0
    %2295 = vmatpush1.msra.mxu0 0.0
    %2296 = vmatprep.subr.mxu0 0.0
    %2297 = vmatpush1.msra.mxu0 0.0
    %2298 = vmatprep.subr.mxu0 0.0
    %2299 = vmatpush1.msra.mxu0 0.0
    %2300 = vmatprep.subr.mxu0 0.0
    %2301 = vmatpush1.msra.mxu0 0.0
    %2302 = vmatprep.subr.mxu0 0.0
    %2303 = vmatpush1.msra.mxu0 0.0
    %2304 = vmatprep.subr.mxu0 0.0
    %2305 = vmatpush1.msra.mxu0 0.0
    %2306 = vmatprep.subr.mxu0 0.0
    %2307 = vmatpush1.msra.mxu0 0.0
    %2308 = vmatprep.subr.mxu0 0.0
    %2309 = vmatpush1.msra.mxu0 0.0
    %2310 = vmatprep.subr.mxu0 0.0
    %2311 = vmatpush1.msra.mxu0 0.0
    %2312 = vmatprep.subr.mxu0 0.0
    %2313 = vmatpush1.msra.mxu0 0.0
    %2314 = vmatprep.subr.mxu0 0.0
    %2315 = vmatpush1.msra.mxu0 0.0
    %2316 = vmatprep.subr.mxu0 0.0
    %2317 = vmatpush1.msra.mxu0 0.0
    %2318 = vmatprep.subr.mxu0 0.0
    %2319 = vmatpush1.msra.mxu0 %v2186
    %2320 = vmatprep.subr.mxu0 0.0
    %2321 = vmatpush1.msra.mxu0 %v2185
    %2322 = vmatprep.subr.mxu0 0.0
    %2323 = vmatpush2.msra.mxu0 0.0
    %2324 = vmatprep.subr.mxu0 0.0
    %2325 = vmatpush2.msra.mxu0 0.0
    %2326 = vmatprep.subr.mxu0 0.0
    %2327 = vmatpush2.msra.mxu0 0.0
    %2328 = vmatprep.subr.mxu0 0.0
    %2329 = vmatpush2.msra.mxu0 0.0
    %2330 = vmatprep.subr.mxu0 0.0
    %2331 = vmatpush2.msra.mxu0 0.0
    %2332 = vmatprep.subr.mxu0 0.0
    %2333 = vmatpush2.msra.mxu0 0.0
    %2334 = vmatprep.subr.mxu0 0.0
    %2335 = vmatpush2.msra.mxu0 0.0
    %2336 = vmatprep.subr.mxu0 0.0
    %2337 = vmatpush2.msra.mxu0 0.0
    %2338 = vmatprep.subr.mxu0 0.0
    %2339 = vmatpush2.msra.mxu0 0.0
    %2340 = vmatprep.subr.mxu0 0.0
    %2341 = vmatpush2.msra.mxu0 0.0
    %2342 = vmatprep.subr.mxu0 0.0
    %2343 = vmatpush2.msra.mxu0 0.0
    %2344 = vmatprep.subr.mxu0 0.0
    %2345 = vmatpush2.msra.mxu0 0.0
    %2346 = vmatprep.subr.mxu0 0.0
    %2347 = vmatpush2.msra.mxu0 0.0
    %2348 = vmatprep.subr.mxu0 0.0
    %2349 = vmatpush2.msra.mxu0 0.0
    %2350 = vmatprep.subr.mxu0 0.0
    %2351 = vmatpush2.msra.mxu0 0.0
    %2352 = vmatprep.subr.mxu0 0.0
    %2353 = vmatpush2.msra.mxu0 0.0
    %2354 = vmatprep.mubr.f32.mxu0 0.0
    %2355 = vmatmul.mubr.f32.gmra.mxu0 %v2195
    %v2356 = vpop.f32.mrf.mxu0
    %v2357 = vadd.f32 %v2192, %v2356
    %v2358 = vpop.f32.mrf.mxu0
    %2359 = vmatprep.mubr.f32.mxu0 0.0
    %2360 = vmatmul.mubr.f32.gmra.mxu0 %v2198
    %v2361 = vpop.f32.mrf.mxu0
    %v2362 = vadd.f32 %v2192, %v2361
    %v2363 = vpop.f32.mrf.mxu0
    %2364 = vmatprep.mubr.f32.mxu0 0.0
    %2365 = vmatmul.mubr.f32.gmra.mxu0 %v2201
    %v2366 = vpop.f32.mrf.mxu0
    %v2367 = vadd.f32 %v2192, %v2366
    %v2368 = vpop.f32.mrf.mxu0
    %2369 = vmatprep.mubr.f32.mxu0 0.0
    %2370 = vmatmul.mubr.f32.gmra.mxu0 %v2204
    %v2371 = vpop.f32.mrf.mxu0
    %v2372 = vadd.f32 %v2192, %v2371
    %v2373 = vpop.f32.mrf.mxu0
    %2374 = vmatprep.mubr.f32.mxu0 0.0
    %2375 = vmatmul.mubr.f32.gmra.mxu0 %v2207
    %v2376 = vpop.f32.mrf.mxu0
    %v2377 = vadd.f32 %v2192, %v2376
    %v2378 = vpop.f32.mrf.mxu0
    %2379 = vmatprep.mubr.f32.mxu0 0.0
    %2380 = vmatmul.mubr.f32.gmra.mxu0 %v2210
    %v2381 = vpop.f32.mrf.mxu0
    %v2382 = vadd.f32 %v2192, %v2381
    %v2383 = vpop.f32.mrf.mxu0
    %2384 = vmatprep.mubr.f32.mxu0 0.0
    %2385 = vmatmul.mubr.f32.gmra.mxu0 %v2213
    %v2386 = vpop.f32.mrf.mxu0
    %v2387 = vadd.f32 %v2192, %v2386
    %v2388 = vpop.f32.mrf.mxu0
    %2389 = vmatprep.mubr.f32.mxu0 0.0
    %2390 = vmatmul.mubr.f32.gmra.mxu0 %v2216
    %v2391 = vpop.f32.mrf.mxu0
    %v2392 = vadd.f32 %v2192, %v2391
    %v2393 = vpop.f32.mrf.mxu0
    %2394 = vmatprep.mubr.f32.mxu0 0.0
    %2395 = vmatmul.mubr.f32.gmra.mxu0 %v2219
    %v2396 = vpop.f32.mrf.mxu0
    %v2397 = vadd.f32 %v2192, %v2396
    %v2398 = vpop.f32.mrf.mxu0
    %2399 = vmatprep.mubr.f32.mxu0 0.0
    %2400 = vmatmul.mubr.f32.gmra.mxu0 %v2222
    %v2401 = vpop.f32.mrf.mxu0
    %v2402 = vadd.f32 %v2192, %v2401
    %v2403 = vpop.f32.mrf.mxu0
    %2404 = vmatprep.mubr.f32.mxu0 0.0
    %2405 = vmatmul.mubr.f32.gmra.mxu0 %v2225
    %v2406 = vpop.f32.mrf.mxu0
    %v2407 = vadd.f32 %v2192, %v2406
    %v2408 = vpop.f32.mrf.mxu0
    %2409 = vmatprep.mubr.f32.mxu0 0.0
    %2410 = vmatmul.mubr.f32.gmra.mxu0 %v2228
    %v2411 = vpop.f32.mrf.mxu0
    %v2412 = vadd.f32 %v2192, %v2411
    %v2413 = vpop.f32.mrf.mxu0
    %2414 = vmatprep.mubr.f32.mxu0 0.0
    %2415 = vmatmul.mubr.f32.gmra.mxu0 %v2231
    %v2416 = vpop.f32.mrf.mxu0
    %v2417 = vadd.f32 %v2192, %v2416
    %v2418 = vpop.f32.mrf.mxu0
    %2419 = vmatprep.mubr.f32.mxu0 0.0
    %2420 = vmatmul.mubr.f32.gmra.mxu0 %v2234
    %v2421 = vpop.f32.mrf.mxu0
    %v2422 = vadd.f32 %v2192, %v2421
    %v2423 = vpop.f32.mrf.mxu0
    %2424 = vmatprep.mubr.f32.mxu0 0.0
    %2425 = vmatmul.mubr.f32.gmra.mxu0 %v2237
    %v2426 = vpop.f32.mrf.mxu0
    %v2427 = vadd.f32 %v2192, %v2426
    %v2428 = vpop.f32.mrf.mxu0
    %2429 = vmatprep.mubr.f32.mxu0 0.0
    %2430 = vmatmul.mubr.f32.gmra.mxu0 %v2240
    %v2431 = vpop.f32.mrf.mxu0
    %v2432 = vadd.f32 %v2192, %v2431
    %v2433 = vpop.f32.mrf.mxu0
    %2434 = vmatprep.mubr.f32.mxu0 0.0
    %2435 = vmatmul.mubr.f32.gmra.mxu0 %v2243
    %v2436 = vpop.f32.mrf.mxu0
    %v2437 = vadd.f32 %v2192, %v2436
    %v2438 = vpop.f32.mrf.mxu0
    %2439 = vmatprep.mubr.f32.mxu0 0.0
    %2440 = vmatmul.mubr.f32.gmra.mxu0 %v2246
    %v2441 = vpop.f32.mrf.mxu0
    %v2442 = vadd.f32 %v2192, %v2441
    %v2443 = vpop.f32.mrf.mxu0
    %2444 = vmatprep.mubr.f32.mxu0 0.0
    %2445 = vmatmul.mubr.f32.gmra.mxu0 %v2249
    %v2446 = vpop.f32.mrf.mxu0
    %v2447 = vadd.f32 %v2192, %v2446
    %v2448 = vpop.f32.mrf.mxu0
    %2449 = vmatprep.mubr.f32.mxu0 0.0
    %2450 = vmatmul.mubr.f32.gmra.mxu0 %v2252
    %v2451 = vpop.f32.mrf.mxu0
    %v2452 = vadd.f32 %v2192, %v2451
    %v2453 = vpop.f32.mrf.mxu0
    %2454 = vmatprep.mubr.f32.mxu0 0.0
    %2455 = vmatmul.mubr.f32.gmra.mxu0 %v2255
    %v2456 = vpop.f32.mrf.mxu0
    %v2457 = vadd.f32 %v2192, %v2456
    %v2458 = vpop.f32.mrf.mxu0
    %2459 = vmatprep.mubr.f32.mxu0 0.0
    %2460 = vmatmul.mubr.f32.gmra.mxu0 %v2258
    %v2461 = vpop.f32.mrf.mxu0
    %v2462 = vadd.f32 %v2192, %v2461
    %v2463 = vpop.f32.mrf.mxu0
    %2464 = vmatprep.mubr.f32.mxu0 0.0
    %2465 = vmatmul.mubr.f32.gmra.mxu0 %v2261
    %v2466 = vpop.f32.mrf.mxu0
    %v2467 = vadd.f32 %v2192, %v2466
    %v2468 = vpop.f32.mrf.mxu0
    %2469 = vmatprep.mubr.f32.mxu0 0.0
    %2470 = vmatmul.mubr.f32.gmra.mxu0 %v2264
    %v2471 = vpop.f32.mrf.mxu0
    %v2472 = vadd.f32 %v2192, %v2471
    %v2473 = vpop.f32.mrf.mxu0
    %2474 = vmatprep.mubr.f32.mxu0 0.0
    %2475 = vmatmul.mubr.f32.gmra.mxu0 %v2267
    %v2476 = vpop.f32.mrf.mxu0
    %v2477 = vadd.f32 %v2192, %v2476
    %v2478 = vpop.f32.mrf.mxu0
    %2479 = vmatprep.mubr.f32.mxu0 0.0
    %2480 = vmatmul.mubr.f32.gmra.mxu0 %v2270
    %v2481 = vpop.f32.mrf.mxu0
    %v2482 = vadd.f32 %v2192, %v2481
    %v2483 = vpop.f32.mrf.mxu0
    %2484 = vmatprep.mubr.f32.mxu0 0.0
    %2485 = vmatmul.mubr.f32.gmra.mxu0 %v2273
    %v2486 = vpop.f32.mrf.mxu0
    %v2487 = vadd.f32 %v2192, %v2486
    %v2488 = vpop.f32.mrf.mxu0
    %2489 = vmatprep.mubr.f32.mxu0 0.0
    %2490 = vmatmul.mubr.f32.gmra.mxu0 %v2276
    %v2491 = vpop.f32.mrf.mxu0
    %v2492 = vadd.f32 %v2192, %v2491
    %v2493 = vpop.f32.mrf.mxu0
    %2494 = vmatprep.mubr.f32.mxu0 0.0
    %2495 = vmatmul.mubr.f32.gmra.mxu0 %v2279
    %v2496 = vpop.f32.mrf.mxu0
    %v2497 = vadd.f32 %v2192, %v2496
    %v2498 = vpop.f32.mrf.mxu0
    %2499 = vmatprep.mubr.f32.mxu0 0.0
    %2500 = vmatmul.mubr.f32.gmra.mxu0 %v2282
    %v2501 = vpop.f32.mrf.mxu0
    %v2502 = vadd.f32 %v2192, %v2501
    %v2503 = vpop.f32.mrf.mxu0
    %2504 = vmatprep.mubr.f32.mxu0 0.0
    %2505 = vmatmul.mubr.f32.gmra.mxu0 %v2285
    %v2506 = vpop.f32.mrf.mxu0
    %v2507 = vadd.f32 %v2192, %v2506
    %v2508 = vpop.f32.mrf.mxu0
    %2509 = vmatprep.mubr.f32.mxu0 0.0
    %2510 = vmatmul.mubr.f32.gmra.mxu0 %v2288
    %v2511 = vpop.f32.mrf.mxu0
    %v2512 = vadd.f32 %v2192, %v2511
    %v2513 = vpop.f32.mrf.mxu0
    %2514 = vdwg.mxu0
    %v2515 = vmax.f32 %v2357, 0.0
    %v2516 = vmax.f32 %v2362, 0.0
    %v2517 = vmax.f32 %v2367, 0.0
    %v2518 = vmax.f32 %v2372, 0.0
    %v2519 = vmax.f32 %v2377, 0.0
    %v2520 = vmax.f32 %v2382, 0.0
    %v2521 = vmax.f32 %v2387, 0.0
    %v2522 = vmax.f32 %v2392, 0.0
    %v2523 = vmax.f32 %v2397, 0.0
    %v2524 = vmax.f32 %v2402, 0.0
    %v2525 = vmax.f32 %v2407, 0.0
    %v2526 = vmax.f32 %v2412, 0.0
    %v2527 = vmax.f32 %v2417, 0.0
    %v2528 = vmax.f32 %v2422, 0.0
    %v2529 = vmax.f32 %v2427, 0.0
    %v2530 = vmax.f32 %v2432, 0.0
    %v2531 = vmax.f32 %v2437, 0.0
    %v2532 = vmax.f32 %v2442, 0.0
    %v2533 = vmax.f32 %v2447, 0.0
    %v2534 = vmax.f32 %v2452, 0.0
    %v2535 = vmax.f32 %v2457, 0.0
    %v2536 = vmax.f32 %v2462, 0.0
    %v2537 = vmax.f32 %v2467, 0.0
    %v2538 = vmax.f32 %v2472, 0.0
    %v2539 = vmax.f32 %v2477, 0.0
    %v2540 = vmax.f32 %v2482, 0.0
    %v2541 = vmax.f32 %v2487, 0.0
    %v2542 = vmax.f32 %v2492, 0.0
    %v2543 = vmax.f32 %v2497, 0.0
    %v2544 = vmax.f32 %v2502, 0.0
    %v2545 = vmax.f32 %v2507, 0.0
    %v2546 = vmax.f32 %v2512, 0.0
    %v2547 = vld [vmem:[%s12] sm:$0xff]
    %v2548 = vld [vmem:[%s12 + $0x8] sm:$0xff]
    %v2549 = vld [vmem:[%s13] sm:$0x1]
    %v2551 = vlaneseq
    %v2552 = vshrl.u32 %v2551, 7
    %v2553 = vsub.s32 0, %v2552
    %v2554 = vrot.slane %v2549, %v2553
    %v2557 = vsel %vm749, %v2515, 0
    %v2560 = vsel %vm749, %v2516, 0
    %v2563 = vsel %vm749, %v2517, 0
    %v2566 = vsel %vm749, %v2518, 0
    %v2569 = vsel %vm749, %v2519, 0
    %v2572 = vsel %vm749, %v2520, 0
    %v2575 = vsel %vm749, %v2521, 0
    %v2578 = vsel %vm749, %v2522, 0
    %v2581 = vsel %vm749, %v2523, 0
    %v2584 = vsel %vm749, %v2524, 0
    %v2587 = vsel %vm749, %v2525, 0
    %v2590 = vsel %vm749, %v2526, 0
    %v2593 = vsel %vm749, %v2527, 0
    %v2596 = vsel %vm749, %v2528, 0
    %v2599 = vsel %vm749, %v2529, 0
    %v2602 = vsel %vm749, %v2530, 0
    %v2605 = vsel %vm749, %v2531, 0
    %v2608 = vsel %vm749, %v2532, 0
    %v2611 = vsel %vm749, %v2533, 0
    %v2614 = vsel %vm749, %v2534, 0
    %v2617 = vsel %vm749, %v2535, 0
    %v2620 = vsel %vm749, %v2536, 0
    %v2623 = vsel %vm749, %v2537, 0
    %v2626 = vsel %vm749, %v2538, 0
    %v2629 = vsel %vm749, %v2539, 0
    %v2632 = vsel %vm749, %v2540, 0
    %v2635 = vsel %vm749, %v2541, 0
    %v2638 = vsel %vm749, %v2542, 0
    %v2641 = vsel %vm749, %v2543, 0
    %v2644 = vsel %vm749, %v2544, 0
    %v2647 = vsel %vm749, %v2545, 0
    %v2650 = vsel %vm749, %v2546, 0
    %2652 = vmatprep.subr.mxu0 0.0
    %2653 = vmatpush1.msra.mxu0 0.0
    %2654 = vmatprep.subr.mxu0 0.0
    %2655 = vmatpush1.msra.mxu0 0.0
    %2656 = vmatprep.subr.mxu0 0.0
    %2657 = vmatpush1.msra.mxu0 0.0
    %2658 = vmatprep.subr.mxu0 0.0
    %2659 = vmatpush1.msra.mxu0 0.0
    %2660 = vmatprep.subr.mxu0 0.0
    %2661 = vmatpush1.msra.mxu0 0.0
    %2662 = vmatprep.subr.mxu0 0.0
    %2663 = vmatpush1.msra.mxu0 0.0
    %2664 = vmatprep.subr.mxu0 0.0
    %2665 = vmatpush1.msra.mxu0 0.0
    %2666 = vmatprep.subr.mxu0 0.0
    %2667 = vmatpush1.msra.mxu0 0.0
    %2668 = vmatprep.subr.mxu0 0.0
    %2669 = vmatpush1.msra.mxu0 0.0
    %2670 = vmatprep.subr.mxu0 0.0
    %2671 = vmatpush1.msra.mxu0 0.0
    %2672 = vmatprep.subr.mxu0 0.0
    %2673 = vmatpush1.msra.mxu0 0.0
    %2674 = vmatprep.subr.mxu0 0.0
    %2675 = vmatpush1.msra.mxu0 0.0
    %2676 = vmatprep.subr.mxu0 0.0
    %2677 = vmatpush1.msra.mxu0 0.0
    %2678 = vmatprep.subr.mxu0 0.0
    %2679 = vmatpush1.msra.mxu0 0.0
    %2680 = vmatprep.subr.mxu0 0.0
    %2681 = vmatpush1.msra.mxu0 %v2548
    %2682 = vmatprep.subr.mxu0 0.0
    %2683 = vmatpush1.msra.mxu0 %v2547
    %2684 = vmatprep.subr.mxu0 0.0
    %2685 = vmatpush2.msra.mxu0 0.0
    %2686 = vmatprep.subr.mxu0 0.0
    %2687 = vmatpush2.msra.mxu0 0.0
    %2688 = vmatprep.subr.mxu0 0.0
    %2689 = vmatpush2.msra.mxu0 0.0
    %2690 = vmatprep.subr.mxu0 0.0
    %2691 = vmatpush2.msra.mxu0 0.0
    %2692 = vmatprep.subr.mxu0 0.0
    %2693 = vmatpush2.msra.mxu0 0.0
    %2694 = vmatprep.subr.mxu0 0.0
    %2695 = vmatpush2.msra.mxu0 0.0
    %2696 = vmatprep.subr.mxu0 0.0
    %2697 = vmatpush2.msra.mxu0 0.0
    %2698 = vmatprep.subr.mxu0 0.0
    %2699 = vmatpush2.msra.mxu0 0.0
    %2700 = vmatprep.subr.mxu0 0.0
    %2701 = vmatpush2.msra.mxu0 0.0
    %2702 = vmatprep.subr.mxu0 0.0
    %2703 = vmatpush2.msra.mxu0 0.0
    %2704 = vmatprep.subr.mxu0 0.0
    %2705 = vmatpush2.msra.mxu0 0.0
    %2706 = vmatprep.subr.mxu0 0.0
    %2707 = vmatpush2.msra.mxu0 0.0
    %2708 = vmatprep.subr.mxu0 0.0
    %2709 = vmatpush2.msra.mxu0 0.0
    %2710 = vmatprep.subr.mxu0 0.0
    %2711 = vmatpush2.msra.mxu0 0.0
    %2712 = vmatprep.subr.mxu0 0.0
    %2713 = vmatpush2.msra.mxu0 0.0
    %2714 = vmatprep.subr.mxu0 0.0
    %2715 = vmatpush2.msra.mxu0 0.0
    %2716 = vmatprep.mubr.f32.mxu0 0.0
    %2717 = vmatmul.mubr.f32.gmra.mxu0 %v2557
    %v2718 = vpop.f32.mrf.mxu0
    %v2719 = vadd.f32 %v2554, %v2718
    %v2720 = vpop.f32.mrf.mxu0
    %2721 = vmatprep.mubr.f32.mxu0 0.0
    %2722 = vmatmul.mubr.f32.gmra.mxu0 %v2560
    %v2723 = vpop.f32.mrf.mxu0
    %v2724 = vadd.f32 %v2554, %v2723
    %v2725 = vpop.f32.mrf.mxu0
    %2726 = vmatprep.mubr.f32.mxu0 0.0
    %2727 = vmatmul.mubr.f32.gmra.mxu0 %v2563
    %v2728 = vpop.f32.mrf.mxu0
    %v2729 = vadd.f32 %v2554, %v2728
    %v2730 = vpop.f32.mrf.mxu0
    %2731 = vmatprep.mubr.f32.mxu0 0.0
    %2732 = vmatmul.mubr.f32.gmra.mxu0 %v2566
    %v2733 = vpop.f32.mrf.mxu0
    %v2734 = vadd.f32 %v2554, %v2733
    %v2735 = vpop.f32.mrf.mxu0
    %2736 = vmatprep.mubr.f32.mxu0 0.0
    %2737 = vmatmul.mubr.f32.gmra.mxu0 %v2569
    %v2738 = vpop.f32.mrf.mxu0
    %v2739 = vadd.f32 %v2554, %v2738
    %v2740 = vpop.f32.mrf.mxu0
    %2741 = vmatprep.mubr.f32.mxu0 0.0
    %2742 = vmatmul.mubr.f32.gmra.mxu0 %v2572
    %v2743 = vpop.f32.mrf.mxu0
    %v2744 = vadd.f32 %v2554, %v2743
    %v2745 = vpop.f32.mrf.mxu0
    %2746 = vmatprep.mubr.f32.mxu0 0.0
    %2747 = vmatmul.mubr.f32.gmra.mxu0 %v2575
    %v2748 = vpop.f32.mrf.mxu0
    %v2749 = vadd.f32 %v2554, %v2748
    %v2750 = vpop.f32.mrf.mxu0
    %2751 = vmatprep.mubr.f32.mxu0 0.0
    %2752 = vmatmul.mubr.f32.gmra.mxu0 %v2578
    %v2753 = vpop.f32.mrf.mxu0
    %v2754 = vadd.f32 %v2554, %v2753
    %v2755 = vpop.f32.mrf.mxu0
    %2756 = vmatprep.mubr.f32.mxu0 0.0
    %2757 = vmatmul.mubr.f32.gmra.mxu0 %v2581
    %v2758 = vpop.f32.mrf.mxu0
    %v2759 = vadd.f32 %v2554, %v2758
    %v2760 = vpop.f32.mrf.mxu0
    %2761 = vmatprep.mubr.f32.mxu0 0.0
    %2762 = vmatmul.mubr.f32.gmra.mxu0 %v2584
    %v2763 = vpop.f32.mrf.mxu0
    %v2764 = vadd.f32 %v2554, %v2763
    %v2765 = vpop.f32.mrf.mxu0
    %2766 = vmatprep.mubr.f32.mxu0 0.0
    %2767 = vmatmul.mubr.f32.gmra.mxu0 %v2587
    %v2768 = vpop.f32.mrf.mxu0
    %v2769 = vadd.f32 %v2554, %v2768
    %v2770 = vpop.f32.mrf.mxu0
    %2771 = vmatprep.mubr.f32.mxu0 0.0
    %2772 = vmatmul.mubr.f32.gmra.mxu0 %v2590
    %v2773 = vpop.f32.mrf.mxu0
    %v2774 = vadd.f32 %v2554, %v2773
    %v2775 = vpop.f32.mrf.mxu0
    %2776 = vmatprep.mubr.f32.mxu0 0.0
    %2777 = vmatmul.mubr.f32.gmra.mxu0 %v2593
    %v2778 = vpop.f32.mrf.mxu0
    %v2779 = vadd.f32 %v2554, %v2778
    %v2780 = vpop.f32.mrf.mxu0
    %2781 = vmatprep.mubr.f32.mxu0 0.0
    %2782 = vmatmul.mubr.f32.gmra.mxu0 %v2596
    %v2783 = vpop.f32.mrf.mxu0
    %v2784 = vadd.f32 %v2554, %v2783
    %v2785 = vpop.f32.mrf.mxu0
    %2786 = vmatprep.mubr.f32.mxu0 0.0
    %2787 = vmatmul.mubr.f32.gmra.mxu0 %v2599
    %v2788 = vpop.f32.mrf.mxu0
    %v2789 = vadd.f32 %v2554, %v2788
    %v2790 = vpop.f32.mrf.mxu0
    %2791 = vmatprep.mubr.f32.mxu0 0.0
    %2792 = vmatmul.mubr.f32.gmra.mxu0 %v2602
    %v2793 = vpop.f32.mrf.mxu0
    %v2794 = vadd.f32 %v2554, %v2793
    %v2795 = vpop.f32.mrf.mxu0
    %2796 = vmatprep.mubr.f32.mxu0 0.0
    %2797 = vmatmul.mubr.f32.gmra.mxu0 %v2605
    %v2798 = vpop.f32.mrf.mxu0
    %v2799 = vadd.f32 %v2554, %v2798
    %v2800 = vpop.f32.mrf.mxu0
    %2801 = vmatprep.mubr.f32.mxu0 0.0
    %2802 = vmatmul.mubr.f32.gmra.mxu0 %v2608
    %v2803 = vpop.f32.mrf.mxu0
    %v2804 = vadd.f32 %v2554, %v2803
    %v2805 = vpop.f32.mrf.mxu0
    %2806 = vmatprep.mubr.f32.mxu0 0.0
    %2807 = vmatmul.mubr.f32.gmra.mxu0 %v2611
    %v2808 = vpop.f32.mrf.mxu0
    %v2809 = vadd.f32 %v2554, %v2808
    %v2810 = vpop.f32.mrf.mxu0
    %2811 = vmatprep.mubr.f32.mxu0 0.0
    %2812 = vmatmul.mubr.f32.gmra.mxu0 %v2614
    %v2813 = vpop.f32.mrf.mxu0
    %v2814 = vadd.f32 %v2554, %v2813
    %v2815 = vpop.f32.mrf.mxu0
    %2816 = vmatprep.mubr.f32.mxu0 0.0
    %2817 = vmatmul.mubr.f32.gmra.mxu0 %v2617
    %v2818 = vpop.f32.mrf.mxu0
    %v2819 = vadd.f32 %v2554, %v2818
    %v2820 = vpop.f32.mrf.mxu0
    %2821 = vmatprep.mubr.f32.mxu0 0.0
    %2822 = vmatmul.mubr.f32.gmra.mxu0 %v2620
    %v2823 = vpop.f32.mrf.mxu0
    %v2824 = vadd.f32 %v2554, %v2823
    %v2825 = vpop.f32.mrf.mxu0
    %2826 = vmatprep.mubr.f32.mxu0 0.0
    %2827 = vmatmul.mubr.f32.gmra.mxu0 %v2623
    %v2828 = vpop.f32.mrf.mxu0
    %v2829 = vadd.f32 %v2554, %v2828
    %v2830 = vpop.f32.mrf.mxu0
    %2831 = vmatprep.mubr.f32.mxu0 0.0
    %2832 = vmatmul.mubr.f32.gmra.mxu0 %v2626
    %v2833 = vpop.f32.mrf.mxu0
    %v2834 = vadd.f32 %v2554, %v2833
    %v2835 = vpop.f32.mrf.mxu0
    %2836 = vmatprep.mubr.f32.mxu0 0.0
    %2837 = vmatmul.mubr.f32.gmra.mxu0 %v2629
    %v2838 = vpop.f32.mrf.mxu0
    %v2839 = vadd.f32 %v2554, %v2838
    %v2840 = vpop.f32.mrf.mxu0
    %2841 = vmatprep.mubr.f32.mxu0 0.0
    %2842 = vmatmul.mubr.f32.gmra.mxu0 %v2632
    %v2843 = vpop.f32.mrf.mxu0
    %v2844 = vadd.f32 %v2554, %v2843
    %v2845 = vpop.f32.mrf.mxu0
    %2846 = vmatprep.mubr.f32.mxu0 0.0
    %2847 = vmatmul.mubr.f32.gmra.mxu0 %v2635
    %v2848 = vpop.f32.mrf.mxu0
    %v2849 = vadd.f32 %v2554, %v2848
    %v2850 = vpop.f32.mrf.mxu0
    %2851 = vmatprep.mubr.f32.mxu0 0.0
    %2852 = vmatmul.mubr.f32.gmra.mxu0 %v2638
    %v2853 = vpop.f32.mrf.mxu0
    %v2854 = vadd.f32 %v2554, %v2853
    %v2855 = vpop.f32.mrf.mxu0
    %2856 = vmatprep.mubr.f32.mxu0 0.0
    %2857 = vmatmul.mubr.f32.gmra.mxu0 %v2641
    %v2858 = vpop.f32.mrf.mxu0
    %v2859 = vadd.f32 %v2554, %v2858
    %v2860 = vpop.f32.mrf.mxu0
    %2861 = vmatprep.mubr.f32.mxu0 0.0
    %2862 = vmatmul.mubr.f32.gmra.mxu0 %v2644
    %v2863 = vpop.f32.mrf.mxu0
    %v2864 = vadd.f32 %v2554, %v2863
    %v2865 = vpop.f32.mrf.mxu0
    %2866 = vmatprep.mubr.f32.mxu0 0.0
    %2867 = vmatmul.mubr.f32.gmra.mxu0 %v2647
    %v2868 = vpop.f32.mrf.mxu0
    %v2869 = vadd.f32 %v2554, %v2868
    %v2870 = vpop.f32.mrf.mxu0
    %2871 = vmatprep.mubr.f32.mxu0 0.0
    %2872 = vmatmul.mubr.f32.gmra.mxu0 %v2650
    %v2873 = vpop.f32.mrf.mxu0
    %v2874 = vadd.f32 %v2554, %v2873
    %v2875 = vpop.f32.mrf.mxu0
    %2876 = vdwg.mxu0
    %v2877 = vmax.f32 %v2719, 0.0
    %v2878 = vmax.f32 %v2724, 0.0
    %v2879 = vmax.f32 %v2729, 0.0
    %v2880 = vmax.f32 %v2734, 0.0
    %v2881 = vmax.f32 %v2739, 0.0
    %v2882 = vmax.f32 %v2744, 0.0
    %v2883 = vmax.f32 %v2749, 0.0
    %v2884 = vmax.f32 %v2754, 0.0
    %v2885 = vmax.f32 %v2759, 0.0
    %v2886 = vmax.f32 %v2764, 0.0
    %v2887 = vmax.f32 %v2769, 0.0
    %v2888 = vmax.f32 %v2774, 0.0
    %v2889 = vmax.f32 %v2779, 0.0
    %v2890 = vmax.f32 %v2784, 0.0
    %v2891 = vmax.f32 %v2789, 0.0
    %v2892 = vmax.f32 %v2794, 0.0
    %v2893 = vmax.f32 %v2799, 0.0
    %v2894 = vmax.f32 %v2804, 0.0
    %v2895 = vmax.f32 %v2809, 0.0
    %v2896 = vmax.f32 %v2814, 0.0
    %v2897 = vmax.f32 %v2819, 0.0
    %v2898 = vmax.f32 %v2824, 0.0
    %v2899 = vmax.f32 %v2829, 0.0
    %v2900 = vmax.f32 %v2834, 0.0
    %v2901 = vmax.f32 %v2839, 0.0
    %v2902 = vmax.f32 %v2844, 0.0
    %v2903 = vmax.f32 %v2849, 0.0
    %v2904 = vmax.f32 %v2854, 0.0
    %v2905 = vmax.f32 %v2859, 0.0
    %v2906 = vmax.f32 %v2864, 0.0
    %v2907 = vmax.f32 %v2869, 0.0
    %v2908 = vmax.f32 %v2874, 0.0
    %v2909 = vmax.f32 %v2877, %v2881
    %v2910 = vmax.f32 %v2878, %v2882
    %v2911 = vmax.f32 %v2879, %v2883
    %v2912 = vmax.f32 %v2880, %v2884
    %v2913 = vmax.f32 %v2909, %v2885
    %v2914 = vmax.f32 %v2910, %v2886
    %v2915 = vmax.f32 %v2911, %v2887
    %v2916 = vmax.f32 %v2912, %v2888
    %v2917 = vmax.f32 %v2913, %v2889
    %v2918 = vmax.f32 %v2914, %v2890
    %v2919 = vmax.f32 %v2915, %v2891
    %v2920 = vmax.f32 %v2916, %v2892
    %v2921 = vmax.f32 %v2917, %v2893
    %v2922 = vmax.f32 %v2918, %v2894
    %v2923 = vmax.f32 %v2919, %v2895
    %v2924 = vmax.f32 %v2920, %v2896
    %v2925 = vmax.f32 %v2921, %v2897
    %v2926 = vmax.f32 %v2922, %v2898
    %v2927 = vmax.f32 %v2923, %v2899
    %v2928 = vmax.f32 %v2924, %v2900
    %v2929 = vmax.f32 %v2925, %v2901
    %v2930 = vmax.f32 %v2926, %v2902
    %v2931 = vmax.f32 %v2927, %v2903
    %v2932 = vmax.f32 %v2928, %v2904
    %v2933 = vmax.f32 %v2929, %v2905
    %v2934 = vmax.f32 %v2930, %v2906
    %v2935 = vmax.f32 %v2931, %v2907
    %v2936 = vmax.f32 %v2932, %v2908
    %2941 = vrot.lane.b32.xlu0 %v2933, 32
    %v2942 = vpop.permute.xlu0 %2941
    %2943 = vrot.lane.b32.xlu0 %v2934, 32
    %v2944 = vpop.permute.xlu0 %2943
    %2945 = vrot.lane.b32.xlu0 %v2935, 32
    %v2946 = vpop.permute.xlu0 %2945
    %2947 = vrot.lane.b32.xlu0 %v2936, 32
    %v2948 = vpop.permute.xlu0 %2947
    %vm2953 = vcmask 261120
    %v2954 = vsel %vm2953, %v1489, %v2942
    %v2955 = vsel %vm2953, %v1490, %v2944
    %v2956 = vsel %vm2953, %v1491, %v2946
    %v2957 = vsel %vm2953, %v1492, %v2948
    %vm2958 = vcmask 523264
    %2959 = vst.msk [vmem:[#allocation2] sm:$0xff] %vm2958, %v2954
    %2960 = vst.msk [vmem:[#allocation2 + $0x8] sm:$0xff] %vm2958, %v2955
    %2961 = vst.msk [vmem:[#allocation2 + $0x10] sm:$0xff] %vm2958, %v2956
    %2962 = vst.msk [vmem:[#allocation2 + $0x18] sm:$0xff] %vm2958, %v2957
    // Predicated region
    $region58: #{tpu_custom_call.1} parent=1 // pred_check
      _
    $region59: #{tpu_custom_call.1} parent=1 // pred_check_branch
      %2964 = sbr.rel (0) target = $region61
    $region60: #{tpu_custom_call.1} parent=1 // pred_region
      %s2966 = ssub.s32 512, 512
      %2967 = vsyncadd [#allocation3], %s2966
      %s2968 = sshll.u32 [#allocation2], 4
      %s2969 = int_to_ptr.vmem [resolvable:$true] %s2968
      %2974 = dma.vmem_to_hbm [thread:$0]  %s2969, 512, %s14, [#allocation3], 128, 128, 8
    $region61: #{tpu_custom_call.1} parent=1 // pred_fallthru
      _
    // Predicated region
    $region62: #{tpu_custom_call.1} parent=1 // pred_check
      _
    $region63: #{tpu_custom_call.1} parent=1 // pred_check_branch
      %2976 = sbr.rel (0) target = $region65
    $region64: #{tpu_custom_call.1} parent=1 // pred_region
      %2977 = dma.done [#allocation3], 512
    $region65: #{tpu_custom_call.1} parent=1 // pred_fallthru
      _
    %2978 = vsyncpa [#allocation3], 1

</llo_original>
